<compile_context>
chip_gen: v5e
topology: v5e:2x2
jax: 0.10.0
libtpu: 0.0.40
codegen_flags: <defaults>
</compile_context>

<pallas_src>
import jax
import jax.numpy as jnp
from jax.experimental import pallas as pl
from jax.experimental.pallas import tpu as pltpu

# ----------------------------- tiny config -----------------------------------
VOCAB = 128
HIDDEN = 64
N_HEADS = 4
N_KV = 2
HEAD_DIM = HIDDEN // N_HEADS          # 16
N_LAYERS = 2
N_EXPERTS = 4
TOP_K = 2
MOE_INTER = 32
SHARED_INTER = 64
EPS = 1e-6
ROPE_THETA = 10000.0
NORM_TOPK = False                      # Qwen2Moe default (norm_topk_prob=False)
SEQ = 8

Q_SIZE = N_HEADS * HEAD_DIM            # 64
KV_SIZE = N_KV * HEAD_DIM              # 32
QKV_SIZE = Q_SIZE + 2 * KV_SIZE        # 128 (a full lane slab)
SCALE = HEAD_DIM ** -0.5

HP = 128                               # hidden padded to the 128-lane vreg width
I_MAX = max(MOE_INTER, SHARED_INTER)   # 64: unified (zero-padded) expert inter dim
E_TOTAL = N_EXPERTS + 1                # routed experts + shared expert
EP = 8                                 # padded expert lanes for in-kernel routing
NEG_INF = -1e30


# ----------------- the single fused whole-model kernel ------------------------
def _model_kernel(x0_ref, cos_ref, sin_ref, rot_ref, fnorm_ref,
                  ln1_ref, qkvw_ref, qkvb_ref, ow_ref, ln2_ref,
                  gate_ref, gu_ref, dn_ref,
                  out_ref, x_s, r_s):
    layer = pl.program_id(0)
    t = x0_ref.shape[0]

    # ---- carry state: (hidden, residual) live in VMEM scratch across layers.
    @pl.when(layer == 0)
    def _init():
        x_s[...] = x0_ref[...]
        r_s[...] = jnp.zeros_like(r_s)

    # ---- residual add + input RMSNorm (padded lanes are provably zero) ----
    res1 = x_s[...] + r_s[...]
    var1 = jnp.sum(res1 * res1, axis=-1, keepdims=True) * (1.0 / HIDDEN)
    h = res1 * jax.lax.rsqrt(var1 + EPS) * ln1_ref[0]

    # ---- fused QKV projection (+bias) and full-width NeoX RoPE.
    #      rotate_half is a constant signed permutation -> one MXU matmul on
    #      the whole 128-lane qkv slab (v lanes: cos=1, sin=0, rot cols = 0).
    hb = h.astype(jnp.bfloat16)
    qkv = jnp.dot(hb, qkvw_ref[0], preferred_element_type=jnp.float32) + qkvb_ref[0]
    rot = jnp.dot(qkv.astype(jnp.bfloat16), rot_ref[...],
                  preferred_element_type=jnp.float32)
    qkv = qkv * cos_ref[...] + rot * sin_ref[...]

    # ---- causal GQA attention; per-head o_proj accumulation on the MXU
    #      (no lane-shuffle concat of head outputs). ----
    row = jax.lax.broadcasted_iota(jnp.int32, (t, t), 0)
    col = jax.lax.broadcasted_iota(jnp.int32, (t, t), 1)
    causal = col <= row
    qkv_b = qkv.astype(jnp.bfloat16)
    ow_full = ow_ref[0]                               # (Q_SIZE, HP) bf16
    group = N_HEADS // N_KV
    o = jnp.zeros((t, HP), jnp.float32)
    for hidx in range(N_HEADS):
        g = hidx // group
        qh = qkv_b[:, hidx * HEAD_DIM:(hidx + 1) * HEAD_DIM]
        kh = qkv_b[:, Q_SIZE + g * HEAD_DIM:Q_SIZE + (g + 1) * HEAD_DIM]
        vh = qkv_b[:, Q_SIZE + KV_SIZE + g * HEAD_DIM:
                   Q_SIZE + KV_SIZE + (g + 1) * HEAD_DIM]
        # q @ k^T without an explicit transpose: contract the last dims.
        s = jax.lax.dot_general(qh, kh, (((1,), (1,)), ((), ())),
                                preferred_element_type=jnp.float32) * SCALE
        s = jnp.where(causal, s, NEG_INF)
        m = jnp.max(s, axis=-1, keepdims=True)
        p = jnp.exp(s - m)
        # approx reciprocal -> EUP; ~1e-4 relative error vs exact softmax.
        p = p * pl.reciprocal(jnp.sum(p, axis=-1, keepdims=True), approx=True)
        attn_h = jnp.dot(p.astype(jnp.bfloat16), vh,
                         preferred_element_type=jnp.float32)
        o = o + jnp.dot(attn_h.astype(jnp.bfloat16),
                        ow_full[hidx * HEAD_DIM:(hidx + 1) * HEAD_DIM, :],
                        preferred_element_type=jnp.float32)

    # ---- residual add + post-attention RMSNorm ----
    res2 = o + res1
    var2 = jnp.sum(res2 * res2, axis=-1, keepdims=True) * (1.0 / HIDDEN)
    moe_in = res2 * jax.lax.rsqrt(var2 + EPS) * ln2_ref[0]

    # ---- router fused in-kernel: logits -> softmax(4) -> top-2 (max + index
    #      tie-break masks) -> shared-gate sigmoid.  gate_ref packs the routed
    #      gate in cols 0..3 and shared_expert_gate in col 4. ----
    lane = jax.lax.broadcasted_iota(jnp.int32, (t, EP), 1).astype(jnp.float32)
    logits = jnp.dot(moe_in, gate_ref[0], preferred_element_type=jnp.float32)
    routed_mask = lane < float(N_EXPERTS)
    rl = jnp.where(routed_mask, logits, NEG_INF)
    m_r = jnp.max(rl, axis=-1, keepdims=True)
    pe = jnp.exp(rl - m_r)
    probs = pe / jnp.sum(pe, axis=-1, keepdims=True)            # exact (routing)
    # top-1 (lowest index wins ties, matching lax.top_k)
    v1 = jnp.max(probs, axis=-1, keepdims=True)
    is1 = jnp.logical_and(probs == v1, routed_mask)
    i1 = jnp.min(jnp.where(is1, lane, float(EP)), axis=-1, keepdims=True)
    oh1 = (lane == i1).astype(jnp.float32)
    # top-2
    probs2 = jnp.where(lane == i1, -1.0, probs)
    v2 = jnp.max(probs2, axis=-1, keepdims=True)
    is2 = jnp.logical_and(probs2 == v2, routed_mask)
    i2 = jnp.min(jnp.where(is2, lane, float(EP)), axis=-1, keepdims=True)
    oh2 = (lane == i2).astype(jnp.float32)
    routed_w = v1 * oh1 + v2 * oh2                               # (t, EP)
    if NORM_TOPK:
        routed_w = routed_w / (v1 + v2)
    shared_logit = jnp.sum(jnp.where(lane == float(N_EXPERTS), logits, 0.0),
                           axis=-1, keepdims=True)
    shared_w = jax.nn.sigmoid(shared_logit)                      # (t, 1)

    # ---- dense MoE: unrolled loop over routed experts + shared expert,
    #      resident zero-padded weight stacks, f32 accumulation. ----
    xb = moe_in.astype(jnp.bfloat16)
    moe_out = jnp.zeros((t, HP), jnp.float32)
    for e in range(E_TOTAL):
        gu = jnp.dot(xb, gu_ref[0, e], preferred_element_type=jnp.float32)
        hid = jax.nn.silu(gu[:, :I_MAX]) * gu[:, I_MAX:]
        eo = jnp.dot(hid.astype(jnp.bfloat16), dn_ref[0, e],
                     preferred_element_type=jnp.float32)
        if e == N_EXPERTS:
            w_e = shared_w
        else:
            w_e = jnp.sum(jnp.where(lane == float(e), routed_w, 0.0),
                          axis=-1, keepdims=True)
        moe_out = moe_out + w_e * eo

    # ---- carry to next layer ----
    x_s[...] = moe_out
    r_s[...] = res2

    # ---- final RMSNorm on the last layer ----
    @pl.when(layer == pl.num_programs(0) - 1)
    def _final():
        z = moe_out + res2
        var = jnp.sum(z * z, axis=-1, keepdims=True) * (1.0 / HIDDEN)
        out_ref[...] = z * jax.lax.rsqrt(var + EPS) * fnorm_ref[...]


# ------------------------------- wrapper --------------------------------------
def model_forward(params, input_ids, positions):
    x0 = params["embed"][input_ids]                  # (T, HP); padded lanes zero
    cos_full, sin_full = rope_tables(positions)      # (T, HP) each
    t = x0.shape[0]

    def const_spec(shape):
        nd = len(shape)
        return pl.BlockSpec(shape, lambda l, _n=nd: (0,) * _n)

    def layer_spec(shape):
        nd = len(shape)
        return pl.BlockSpec((1,) + shape[1:], lambda l, _n=nd: (l,) + (0,) * (_n - 1))

    grid_spec = pltpu.PrefetchScalarGridSpec(
        num_scalar_prefetch=0,
        grid=(N_LAYERS,),
        in_specs=[
            const_spec((t, HP)),                          # embedded input
            const_spec((t, HP)),                          # cos (full slab)
            const_spec((t, HP)),                          # sin (full slab)
            const_spec((HP, HP)),                         # rotate-half permutation
            const_spec((1, HP)),                          # final norm weight
            layer_spec((N_LAYERS, 1, HP)),                # input_layernorm
            layer_spec((N_LAYERS, HP, QKV_SIZE)),         # qkv weight
            layer_spec((N_LAYERS, 1, QKV_SIZE)),          # qkv bias
            layer_spec((N_LAYERS, Q_SIZE, HP)),           # o_proj weight
            layer_spec((N_LAYERS, 1, HP)),                # post_attention_layernorm
            layer_spec((N_LAYERS, HP, EP)),               # router gate (+shared gate)
            layer_spec((N_LAYERS, E_TOTAL, HP, 2 * I_MAX)),  # experts gate_up
            layer_spec((N_LAYERS, E_TOTAL, I_MAX, HP)),      # experts down
        ],
        out_specs=pl.BlockSpec((t, HP), lambda l: (0, 0)),
        scratch_shapes=[pltpu.VMEM((t, HP), jnp.float32),     # hidden carry
                        pltpu.VMEM((t, HP), jnp.float32)],    # residual carry
    )
    out = pl.pallas_call(
        _model_kernel,
        out_shape=jax.ShapeDtypeStruct((t, HP), jnp.float32),
        grid_spec=grid_spec,
        compiler_params=pltpu.CompilerParams(
            dimension_semantics=("arbitrary",)),              # sequential layers
    )(x0, cos_full, sin_full, params["rot_full"], params["norm"],
      params["ln1"], params["qkv_w"], params["qkv_b"], params["o_w"],
      params["ln2"], params["gate"], params["experts_gate_up"],
      params["experts_down"])
    return out[:, :HIDDEN]
    # TODO(synk): compute_logits / lm_head is a separate vLLM call and is not
    # part of Qwen2MoeForCausalLM.forward, so it is omitted here.


# ------------------------------- glue ------------------------------------------
def rope_tables(positions):
    """Lane-dense (T, 128) cos/sin slabs covering q, k and (identity) v lanes."""
    half = HEAD_DIM // 2
    inv_freq = 1.0 / (ROPE_THETA **
                      (jnp.arange(half, dtype=jnp.float32) * 2.0 / HEAD_DIM))
    freqs = positions.astype(jnp.float32)[:, None] * inv_freq[None, :]  # (T, half)
    cos = jnp.concatenate([jnp.cos(freqs)] * 2, axis=-1)   # (T, HEAD_DIM), NeoX
    sin = jnp.concatenate([jnp.sin(freqs)] * 2, axis=-1)
    t = positions.shape[0]
    cos_full = jnp.concatenate(
        [jnp.tile(cos, (1, N_HEADS)), jnp.tile(cos, (1, N_KV)),
         jnp.ones((t, KV_SIZE), jnp.float32)], axis=-1)
    sin_full = jnp.concatenate(
        [jnp.tile(sin, (1, N_HEADS)), jnp.tile(sin, (1, N_KV)),
         jnp.zeros((t, KV_SIZE), jnp.float32)], axis=-1)
    return cos_full, sin_full


# ------------------------------ params ------------------------------------------
def _rotate_half_block(num_heads):
    """Signed permutation P so that x @ P == rotate_half(x) per head."""
    half = HEAD_DIM // 2
    blk = jnp.zeros((HEAD_DIM, HEAD_DIM), jnp.float32)
    blk = blk.at[half:, :half].set(-jnp.eye(half, dtype=jnp.float32))
    blk = blk.at[:half, half:].set(jnp.eye(half, dtype=jnp.float32))
    return jnp.kron(jnp.eye(num_heads, dtype=jnp.float32), blk)


def init_params(key):
    keys = iter(jax.random.split(key, 256))

    def nrm(shape, scale=0.02):
        return jax.random.normal(next(keys), shape, dtype=jnp.float32) * scale

    def pad2(a, rows, cols):
        r, c = a.shape
        return jnp.pad(a, ((0, rows - r), (0, cols - c)))

    # rotate-half permutation: block-diag(q heads, k heads, zero block for v)
    rot_full = jnp.zeros((HP, HP), jnp.float32)
    rot_full = rot_full.at[:Q_SIZE, :Q_SIZE].set(_rotate_half_block(N_HEADS))
    rot_full = rot_full.at[Q_SIZE:Q_SIZE + KV_SIZE,
                           Q_SIZE:Q_SIZE + KV_SIZE].set(_rotate_half_block(N_KV))

    ln1, ln2, qkvw, qkvb, ow, gate, gu_s, dn_s = [], [], [], [], [], [], [], []
    for _ in range(N_LAYERS):
        qkv_w = nrm((HIDDEN, QKV_SIZE))
        qkv_b = nrm((QKV_SIZE,))
        o_w = nrm((Q_SIZE, HIDDEN))
        gate_w = nrm((HIDDEN, N_EXPERTS))
        shared_expert_gate = nrm((HIDDEN, 1))
        experts_gate_up = nrm((N_EXPERTS, HIDDEN, 2 * MOE_INTER))
        experts_down = nrm((N_EXPERTS, MOE_INTER, HIDDEN))
        shared_gate_up = nrm((HIDDEN, 2 * SHARED_INTER))
        shared_down = nrm((SHARED_INTER, HIDDEN))

        # routed gate (cols 0..3) + shared_expert_gate (col 4), zero-padded.
        g = jnp.zeros((HP, EP), jnp.float32)
        g = g.at[:HIDDEN, :N_EXPERTS].set(gate_w)
        g = g.at[:HIDDEN, N_EXPERTS:N_EXPERTS + 1].set(shared_expert_gate)

        # routed + shared experts packed into one zero-padded lane-dense stack;
        # shared expert = index N_EXPERTS.
        gu_l = jnp.zeros((E_TOTAL, HP, 2 * I_MAX), jnp.float32)
        dn_l = jnp.zeros((E_TOTAL, I_MAX, HP), jnp.float32)
        for e in range(N_EXPERTS):
            gu_l = gu_l.at[e, :HIDDEN, :MOE_INTER].set(experts_gate_up[e, :, :MOE_INTER])
            gu_l = gu_l.at[e, :HIDDEN, I_MAX:I_MAX + MOE_INTER].set(
                experts_gate_up[e, :, MOE_INTER:])
            dn_l = dn_l.at[e, :MOE_INTER, :HIDDEN].set(experts_down[e])
        gu_l = gu_l.at[N_EXPERTS, :HIDDEN, :SHARED_INTER].set(shared_gate_up[:, :SHARED_INTER])
        gu_l = gu_l.at[N_EXPERTS, :HIDDEN, I_MAX:I_MAX + SHARED_INTER].set(
            shared_gate_up[:, SHARED_INTER:])
        dn_l = dn_l.at[N_EXPERTS, :SHARED_INTER, :HIDDEN].set(shared_down)

        # NOTE: lanes HIDDEN..HP-1 of every weight are zero-padded; this is what
        # keeps the padded activation lanes exactly zero (RMSNorm correctness).
        ln1.append(pad2(jnp.ones((1, HIDDEN), jnp.float32), 1, HP))
        ln2.append(pad2(jnp.ones((1, HIDDEN), jnp.float32), 1, HP))
        qkvw.append(pad2(qkv_w, HP, QKV_SIZE))
        qkvb.append(qkv_b.reshape(1, QKV_SIZE))
        ow.append(pad2(o_w, Q_SIZE, HP))
        gate.append(g)
        gu_s.append(gu_l)
        dn_s.append(dn_l)

    return {
        "embed": pad2(nrm((VOCAB, HIDDEN)), VOCAB, HP),
        "norm": pad2(jnp.ones((1, HIDDEN), jnp.float32), 1, HP),
        "rot_full": rot_full.astype(jnp.bfloat16),
        "ln1": jnp.stack(ln1),
        "ln2": jnp.stack(ln2),
        "qkv_w": jnp.stack(qkvw).astype(jnp.bfloat16),
        "qkv_b": jnp.stack(qkvb),
        "o_w": jnp.stack(ow).astype(jnp.bfloat16),
        "gate": jnp.stack(gate),                              # f32 routing gate
        "experts_gate_up": jnp.stack(gu_s).astype(jnp.bfloat16),
        "experts_down": jnp.stack(dn_s).astype(jnp.bfloat16),
    }


# ------------------------------- main --------------------------------------------
if __name__ == "__main__":
    key = jax.random.PRNGKey(0)
    k_param, k_ids = jax.random.split(key)
    params = init_params(k_param)
    input_ids = jax.random.randint(k_ids, (SEQ,), 0, VOCAB, dtype=jnp.int32)
    positions = jnp.arange(SEQ, dtype=jnp.int32)

    fwd = jax.jit(model_forward)
    hidden_states = fwd(params, input_ids, positions)
    jax.block_until_ready(hidden_states)

    assert hidden_states.shape == (SEQ, HIDDEN)
    assert bool(jnp.all(jnp.isfinite(hidden_states)))
    print("KERNEL_OK")
</pallas_src>

<mosaic_0001>
module attributes {stable_mosaic.version = 11 : i64} {
  func.func @_model_kernel(%arg0: i32, %arg1: memref<8x128xf32, #tpu.memory_space<vmem>>, %arg2: memref<8x128xf32, #tpu.memory_space<vmem>>, %arg3: memref<8x128xf32, #tpu.memory_space<vmem>>, %arg4: memref<128x128xbf16, #tpu.memory_space<vmem>>, %arg5: memref<1x128xf32, #tpu.memory_space<vmem>>, %arg6: memref<1x1x128xf32, #tpu.memory_space<vmem>>, %arg7: memref<1x128x128xbf16, #tpu.memory_space<vmem>>, %arg8: memref<1x1x128xf32, #tpu.memory_space<vmem>>, %arg9: memref<1x64x128xbf16, #tpu.memory_space<vmem>>, %arg10: memref<1x1x128xf32, #tpu.memory_space<vmem>>, %arg11: memref<1x128x8xf32, #tpu.memory_space<vmem>>, %arg12: memref<1x5x128x128xbf16, #tpu.memory_space<vmem>>, %arg13: memref<1x5x64x128xbf16, #tpu.memory_space<vmem>>, %arg14: memref<8x128xf32, #tpu.memory_space<vmem>>, %arg15: memref<8x128xf32, #tpu.memory_space<vmem>>, %arg16: memref<8x128xf32, #tpu.memory_space<vmem>>) attributes {dimension_semantics = [#tpu.dimension_semantics<arbitrary>], iteration_bounds = array<i64: 2>, scalar_prefetch = 0 : i64, scratch_operands = 2 : i64, tpu.core_type = #tpu.core_type<tc>, window_params = [{pipeline_mode = #tpu.pipeline_mode<synchronous>, transform_indices = @transform_0, window_bounds = array<i64: 8, 128>}, {pipeline_mode = #tpu.pipeline_mode<synchronous>, transform_indices = @transform_1, window_bounds = array<i64: 8, 128>}, {pipeline_mode = #tpu.pipeline_mode<synchronous>, transform_indices = @transform_2, window_bounds = array<i64: 8, 128>}, {pipeline_mode = #tpu.pipeline_mode<synchronous>, transform_indices = @transform_3, window_bounds = array<i64: 128, 128>}, {pipeline_mode = #tpu.pipeline_mode<synchronous>, transform_indices = @transform_4, window_bounds = array<i64: 1, 128>}, {transform_indices = @transform_5, window_bounds = array<i64: 1, 1, 128>}, {transform_indices = @transform_6, window_bounds = array<i64: 1, 128, 128>}, {transform_indices = @transform_7, window_bounds = array<i64: 1, 1, 128>}, {transform_indices = @transform_8, window_bounds = array<i64: 1, 64, 128>}, {transform_indices = @transform_9, window_bounds = array<i64: 1, 1, 128>}, {transform_indices = @transform_10, window_bounds = array<i64: 1, 128, 8>}, {transform_indices = @transform_11, window_bounds = array<i64: 1, 5, 128, 128>}, {transform_indices = @transform_12, window_bounds = array<i64: 1, 5, 64, 128>}, {pipeline_mode = #tpu.pipeline_mode<synchronous>, transform_indices = @transform_13, window_bounds = array<i64: 8, 128>}]} {
    %c0_i32 = arith.constant 0 : i32
    %0 = arith.cmpi eq, %arg0, %c0_i32 : i32
    %1 = arith.extui %0 : i1 to i32
    %c0_i32_0 = arith.constant 0 : i32
    %2 = arith.cmpi ne, %1, %c0_i32_0 : i32
    scf.if %2 {
      %c0_149 = arith.constant 0 : index
      %c0_150 = arith.constant 0 : index
      %344 = vector.load %arg1[%c0_149, %c0_150] : memref<8x128xf32, #tpu.memory_space<vmem>>, vector<8x128xf32>
      %c0_151 = arith.constant 0 : index
      %c0_152 = arith.constant 0 : index
      %345 = vector.load %arg15[%c0_151, %c0_152] : memref<8x128xf32, #tpu.memory_space<vmem>>, vector<8x128xf32>
      tpu.vector_store %arg15[%c0_151, %c0_152], %344 {strides = array<i32>} : memref<8x128xf32, #tpu.memory_space<vmem>>, vector<8x128xf32>,
      %cst_153 = arith.constant 0.000000e+00 : f32
      %346 = vector.broadcast %cst_153 : f32 to vector<8x128xf32>
      %c0_154 = arith.constant 0 : index
      %c0_155 = arith.constant 0 : index
      %347 = vector.load %arg16[%c0_154, %c0_155] : memref<8x128xf32, #tpu.memory_space<vmem>>, vector<8x128xf32>
      tpu.vector_store %arg16[%c0_154, %c0_155], %346 {strides = array<i32>} : memref<8x128xf32, #tpu.memory_space<vmem>>, vector<8x128xf32>,
    } else {
    }
    %c0 = arith.constant 0 : index
    %c0_1 = arith.constant 0 : index
    %3 = vector.load %arg15[%c0, %c0_1] : memref<8x128xf32, #tpu.memory_space<vmem>>, vector<8x128xf32>
    %c0_2 = arith.constant 0 : index
    %c0_3 = arith.constant 0 : index
    %4 = vector.load %arg16[%c0_2, %c0_3] : memref<8x128xf32, #tpu.memory_space<vmem>>, vector<8x128xf32>
    %5 = arith.addf %3, %4 : vector<8x128xf32>
    %6 = arith.mulf %5, %5 : vector<8x128xf32>
    %cst = arith.constant dense<0.000000e+00> : vector<8xf32>
    %7 = vector.multi_reduction <add>, %6, %cst [1] : vector<8x128xf32> to vector<8xf32>
    %8 = vector.shape_cast %7 : vector<8xf32> to vector<8x1xf32>
    %cst_4 = arith.constant 1.562500e-02 : f32
    %9 = vector.broadcast %cst_4 : f32 to vector<8x1xf32>
    %10 = arith.mulf %8, %9 : vector<8x1xf32>
    %cst_5 = arith.constant 9.99999997E-7 : f32
    %11 = vector.broadcast %cst_5 : f32 to vector<8x1xf32>
    %12 = arith.addf %10, %11 : vector<8x1xf32>
    %13 = math.rsqrt %12 : vector<8x1xf32>
    %14 = vector.broadcast %13 : vector<8x1xf32> to vector<8x128xf32>
    %15 = arith.mulf %5, %14 : vector<8x128xf32>
    %c0_6 = arith.constant 0 : index
    %c0_7 = arith.constant 0 : index
    %c0_8 = arith.constant 0 : index
    %16 = vector.load %arg6[%c0_6, %c0_7, %c0_8] : memref<1x1x128xf32, #tpu.memory_space<vmem>>, vector<1x1x128xf32>
    %17 = vector.shape_cast %16 : vector<1x1x128xf32> to vector<1x128xf32>
    %18 = vector.broadcast %17 : vector<1x128xf32> to vector<8x128xf32>
    %19 = arith.mulf %15, %18 : vector<8x128xf32>
    %20 = arith.truncf %19 : vector<8x128xf32> to vector<8x128xbf16>
    %c0_9 = arith.constant 0 : index
    %c0_10 = arith.constant 0 : index
    %c0_11 = arith.constant 0 : index
    %21 = vector.load %arg7[%c0_9, %c0_10, %c0_11] : memref<1x128x128xbf16, #tpu.memory_space<vmem>>, vector<1x128x128xbf16>
    %22 = vector.shape_cast %21 : vector<1x128x128xbf16> to vector<128x128xbf16>
    %cst_12 = arith.constant dense<0.000000e+00> : vector<8x128xf32>
    %23 = tpu.matmul %20, %22, %cst_12 {dimension_numbers = #tpu.dot_dimension_numbers<[1], [0], [0], [1], [0, 0, 1, 1], [], []>} : vector<8x128xbf16>, vector<128x128xbf16>, vector<8x128xf32> -> vector<8x128xf32>
    %c0_13 = arith.constant 0 : index
    %c0_14 = arith.constant 0 : index
    %c0_15 = arith.constant 0 : index
    %24 = vector.load %arg8[%c0_13, %c0_14, %c0_15] : memref<1x1x128xf32, #tpu.memory_space<vmem>>, vector<1x1x128xf32>
    %25 = vector.shape_cast %24 : vector<1x1x128xf32> to vector<1x128xf32>
    %26 = vector.broadcast %25 : vector<1x128xf32> to vector<8x128xf32>
    %27 = arith.addf %23, %26 : vector<8x128xf32>
    %28 = arith.truncf %27 : vector<8x128xf32> to vector<8x128xbf16>
    %c0_16 = arith.constant 0 : index
    %c0_17 = arith.constant 0 : index
    %29 = vector.load %arg4[%c0_16, %c0_17] : memref<128x128xbf16, #tpu.memory_space<vmem>>, vector<128x128xbf16>
    %cst_18 = arith.constant dense<0.000000e+00> : vector<8x128xf32>
    %30 = tpu.matmul %28, %29, %cst_18 {dimension_numbers = #tpu.dot_dimension_numbers<[1], [0], [0], [1], [0, 0, 1, 1], [], []>} : vector<8x128xbf16>, vector<128x128xbf16>, vector<8x128xf32> -> vector<8x128xf32>
    %c0_19 = arith.constant 0 : index
    %c0_20 = arith.constant 0 : index
    %31 = vector.load %arg2[%c0_19, %c0_20] : memref<8x128xf32, #tpu.memory_space<vmem>>, vector<8x128xf32>
    %32 = arith.mulf %27, %31 : vector<8x128xf32>
    %c0_21 = arith.constant 0 : index
    %c0_22 = arith.constant 0 : index
    %33 = vector.load %arg3[%c0_21, %c0_22] : memref<8x128xf32, #tpu.memory_space<vmem>>, vector<8x128xf32>
    %34 = arith.mulf %30, %33 : vector<8x128xf32>
    %35 = arith.addf %32, %34 : vector<8x128xf32>
    %36 = tpu.iota {dimensions = array<i32: 0>} : vector<8x8xi32>
    %37 = tpu.iota {dimensions = array<i32: 1>} : vector<8x8xi32>
    %38 = arith.cmpi sle, %37, %36 : vector<8x8xi32>
    %39 = arith.truncf %35 : vector<8x128xf32> to vector<8x128xbf16>
    %c0_23 = arith.constant 0 : index
    %c0_24 = arith.constant 0 : index
    %c0_25 = arith.constant 0 : index
    %40 = vector.load %arg9[%c0_23, %c0_24, %c0_25] : memref<1x64x128xbf16, #tpu.memory_space<vmem>>, vector<1x64x128xbf16>
    %41 = vector.shape_cast %40 : vector<1x64x128xbf16> to vector<64x128xbf16>
    %cst_26 = arith.constant 0.000000e+00 : f32
    %42 = vector.broadcast %cst_26 : f32 to vector<8x128xf32>
    %43 = vector.extract_strided_slice %39 {offsets = [0, 0], sizes = [8, 16], strides = [1, 1]} : vector<8x128xbf16> to vector<8x16xbf16>
    %44 = vector.extract_strided_slice %39 {offsets = [0, 64], sizes = [8, 16], strides = [1, 1]} : vector<8x128xbf16> to vector<8x16xbf16>
    %45 = vector.extract_strided_slice %39 {offsets = [0, 96], sizes = [8, 16], strides = [1, 1]} : vector<8x128xbf16> to vector<8x16xbf16>
    %cst_27 = arith.constant dense<0.000000e+00> : vector<8x8xf32>
    %46 = tpu.matmul %43, %44, %cst_27 {dimension_numbers = #tpu.dot_dimension_numbers<[1], [1], [0], [0], [0, 0, 1, 0], [], []>} : vector<8x16xbf16>, vector<8x16xbf16>, vector<8x8xf32> -> vector<8x8xf32>
    %cst_28 = arith.constant 2.500000e-01 : f32
    %47 = vector.broadcast %cst_28 : f32 to vector<8x8xf32>
    %48 = arith.mulf %46, %47 : vector<8x8xf32>
    %cst_29 = arith.constant -1.000000e+30 : f32
    %49 = vector.broadcast %cst_29 : f32 to vector<8x8xf32>
    %50 = arith.select %38, %48, %49 : vector<8x8xi1>, vector<8x8xf32>
    %cst_30 = arith.constant dense<0xFF800000> : vector<8xf32>
    %51 = vector.multi_reduction <maximumf>, %50, %cst_30 [1] : vector<8x8xf32> to vector<8xf32>
    %52 = vector.shape_cast %51 : vector<8xf32> to vector<8x1xf32>
    %53 = vector.broadcast %52 : vector<8x1xf32> to vector<8x8xf32>
    %54 = arith.subf %50, %53 : vector<8x8xf32>
    %55 = math.exp %54 : vector<8x8xf32>
    %cst_31 = arith.constant dense<0.000000e+00> : vector<8xf32>
    %56 = vector.multi_reduction <add>, %55, %cst_31 [1] : vector<8x8xf32> to vector<8xf32>
    %57 = vector.shape_cast %56 : vector<8xf32> to vector<8x1xf32>
    %58 = tpu.reciprocal %57 {approx = true} : vector<8x1xf32> -> vector<8x1xf32>
    %59 = vector.broadcast %58 : vector<8x1xf32> to vector<8x8xf32>
    %60 = arith.mulf %55, %59 : vector<8x8xf32>
    %61 = arith.truncf %60 : vector<8x8xf32> to vector<8x8xbf16>
    %cst_32 = arith.constant dense<0.000000e+00> : vector<8x16xf32>
    %62 = tpu.matmul %61, %45, %cst_32 {dimension_numbers = #tpu.dot_dimension_numbers<[1], [0], [0], [1], [0, 0, 1, 1], [], []>} : vector<8x8xbf16>, vector<8x16xbf16>, vector<8x16xf32> -> vector<8x16xf32>
    %63 = arith.truncf %62 : vector<8x16xf32> to vector<8x16xbf16>
    %64 = vector.extract_strided_slice %41 {offsets = [0, 0], sizes = [16, 128], strides = [1, 1]} : vector<64x128xbf16> to vector<16x128xbf16>
    %cst_33 = arith.constant dense<0.000000e+00> : vector<8x128xf32>
    %65 = tpu.matmul %63, %64, %cst_33 {dimension_numbers = #tpu.dot_dimension_numbers<[1], [0], [0], [1], [0, 0, 1, 1], [], []>} : vector<8x16xbf16>, vector<16x128xbf16>, vector<8x128xf32> -> vector<8x128xf32>
    %66 = arith.addf %42, %65 : vector<8x128xf32>
    %67 = vector.extract_strided_slice %39 {offsets = [0, 16], sizes = [8, 16], strides = [1, 1]} : vector<8x128xbf16> to vector<8x16xbf16>
    %68 = vector.extract_strided_slice %39 {offsets = [0, 64], sizes = [8, 16], strides = [1, 1]} : vector<8x128xbf16> to vector<8x16xbf16>
    %69 = vector.extract_strided_slice %39 {offsets = [0, 96], sizes = [8, 16], strides = [1, 1]} : vector<8x128xbf16> to vector<8x16xbf16>
    %cst_34 = arith.constant dense<0.000000e+00> : vector<8x8xf32>
    %70 = tpu.matmul %67, %68, %cst_34 {dimension_numbers = #tpu.dot_dimension_numbers<[1], [1], [0], [0], [0, 0, 1, 0], [], []>} : vector<8x16xbf16>, vector<8x16xbf16>, vector<8x8xf32> -> vector<8x8xf32>
    %cst_35 = arith.constant 2.500000e-01 : f32
    %71 = vector.broadcast %cst_35 : f32 to vector<8x8xf32>
    %72 = arith.mulf %70, %71 : vector<8x8xf32>
    %cst_36 = arith.constant -1.000000e+30 : f32
    %73 = vector.broadcast %cst_36 : f32 to vector<8x8xf32>
    %74 = arith.select %38, %72, %73 : vector<8x8xi1>, vector<8x8xf32>
    %cst_37 = arith.constant dense<0xFF800000> : vector<8xf32>
    %75 = vector.multi_reduction <maximumf>, %74, %cst_37 [1] : vector<8x8xf32> to vector<8xf32>
    %76 = vector.shape_cast %75 : vector<8xf32> to vector<8x1xf32>
    %77 = vector.broadcast %76 : vector<8x1xf32> to vector<8x8xf32>
    %78 = arith.subf %74, %77 : vector<8x8xf32>
    %79 = math.exp %78 : vector<8x8xf32>
    %cst_38 = arith.constant dense<0.000000e+00> : vector<8xf32>
    %80 = vector.multi_reduction <add>, %79, %cst_38 [1] : vector<8x8xf32> to vector<8xf32>
    %81 = vector.shape_cast %80 : vector<8xf32> to vector<8x1xf32>
    %82 = tpu.reciprocal %81 {approx = true} : vector<8x1xf32> -> vector<8x1xf32>
    %83 = vector.broadcast %82 : vector<8x1xf32> to vector<8x8xf32>
    %84 = arith.mulf %79, %83 : vector<8x8xf32>
    %85 = arith.truncf %84 : vector<8x8xf32> to vector<8x8xbf16>
    %cst_39 = arith.constant dense<0.000000e+00> : vector<8x16xf32>
    %86 = tpu.matmul %85, %69, %cst_39 {dimension_numbers = #tpu.dot_dimension_numbers<[1], [0], [0], [1], [0, 0, 1, 1], [], []>} : vector<8x8xbf16>, vector<8x16xbf16>, vector<8x16xf32> -> vector<8x16xf32>
    %87 = arith.truncf %86 : vector<8x16xf32> to vector<8x16xbf16>
    %88 = vector.extract_strided_slice %41 {offsets = [16, 0], sizes = [16, 128], strides = [1, 1]} : vector<64x128xbf16> to vector<16x128xbf16>
    %cst_40 = arith.constant dense<0.000000e+00> : vector<8x128xf32>
    %89 = tpu.matmul %87, %88, %cst_40 {dimension_numbers = #tpu.dot_dimension_numbers<[1], [0], [0], [1], [0, 0, 1, 1], [], []>} : vector<8x16xbf16>, vector<16x128xbf16>, vector<8x128xf32> -> vector<8x128xf32>
    %90 = arith.addf %66, %89 : vector<8x128xf32>
    %91 = vector.extract_strided_slice %39 {offsets = [0, 32], sizes = [8, 16], strides = [1, 1]} : vector<8x128xbf16> to vector<8x16xbf16>
    %92 = vector.extract_strided_slice %39 {offsets = [0, 80], sizes = [8, 16], strides = [1, 1]} : vector<8x128xbf16> to vector<8x16xbf16>
    %93 = vector.extract_strided_slice %39 {offsets = [0, 112], sizes = [8, 16], strides = [1, 1]} : vector<8x128xbf16> to vector<8x16xbf16>
    %cst_41 = arith.constant dense<0.000000e+00> : vector<8x8xf32>
    %94 = tpu.matmul %91, %92, %cst_41 {dimension_numbers = #tpu.dot_dimension_numbers<[1], [1], [0], [0], [0, 0, 1, 0], [], []>} : vector<8x16xbf16>, vector<8x16xbf16>, vector<8x8xf32> -> vector<8x8xf32>
    %cst_42 = arith.constant 2.500000e-01 : f32
    %95 = vector.broadcast %cst_42 : f32 to vector<8x8xf32>
    %96 = arith.mulf %94, %95 : vector<8x8xf32>
    %cst_43 = arith.constant -1.000000e+30 : f32
    %97 = vector.broadcast %cst_43 : f32 to vector<8x8xf32>
    %98 = arith.select %38, %96, %97 : vector<8x8xi1>, vector<8x8xf32>
    %cst_44 = arith.constant dense<0xFF800000> : vector<8xf32>
    %99 = vector.multi_reduction <maximumf>, %98, %cst_44 [1] : vector<8x8xf32> to vector<8xf32>
    %100 = vector.shape_cast %99 : vector<8xf32> to vector<8x1xf32>
    %101 = vector.broadcast %100 : vector<8x1xf32> to vector<8x8xf32>
    %102 = arith.subf %98, %101 : vector<8x8xf32>
    %103 = math.exp %102 : vector<8x8xf32>
    %cst_45 = arith.constant dense<0.000000e+00> : vector<8xf32>
    %104 = vector.multi_reduction <add>, %103, %cst_45 [1] : vector<8x8xf32> to vector<8xf32>
    %105 = vector.shape_cast %104 : vector<8xf32> to vector<8x1xf32>
    %106 = tpu.reciprocal %105 {approx = true} : vector<8x1xf32> -> vector<8x1xf32>
    %107 = vector.broadcast %106 : vector<8x1xf32> to vector<8x8xf32>
    %108 = arith.mulf %103, %107 : vector<8x8xf32>
    %109 = arith.truncf %108 : vector<8x8xf32> to vector<8x8xbf16>
    %cst_46 = arith.constant dense<0.000000e+00> : vector<8x16xf32>
    %110 = tpu.matmul %109, %93, %cst_46 {dimension_numbers = #tpu.dot_dimension_numbers<[1], [0], [0], [1], [0, 0, 1, 1], [], []>} : vector<8x8xbf16>, vector<8x16xbf16>, vector<8x16xf32> -> vector<8x16xf32>
    %111 = arith.truncf %110 : vector<8x16xf32> to vector<8x16xbf16>
    %112 = vector.extract_strided_slice %41 {offsets = [32, 0], sizes = [16, 128], strides = [1, 1]} : vector<64x128xbf16> to vector<16x128xbf16>
    %cst_47 = arith.constant dense<0.000000e+00> : vector<8x128xf32>
    %113 = tpu.matmul %111, %112, %cst_47 {dimension_numbers = #tpu.dot_dimension_numbers<[1], [0], [0], [1], [0, 0, 1, 1], [], []>} : vector<8x16xbf16>, vector<16x128xbf16>, vector<8x128xf32> -> vector<8x128xf32>
    %114 = arith.addf %90, %113 : vector<8x128xf32>
    %115 = vector.extract_strided_slice %39 {offsets = [0, 48], sizes = [8, 16], strides = [1, 1]} : vector<8x128xbf16> to vector<8x16xbf16>
    %116 = vector.extract_strided_slice %39 {offsets = [0, 80], sizes = [8, 16], strides = [1, 1]} : vector<8x128xbf16> to vector<8x16xbf16>
    %117 = vector.extract_strided_slice %39 {offsets = [0, 112], sizes = [8, 16], strides = [1, 1]} : vector<8x128xbf16> to vector<8x16xbf16>
    %cst_48 = arith.constant dense<0.000000e+00> : vector<8x8xf32>
    %118 = tpu.matmul %115, %116, %cst_48 {dimension_numbers = #tpu.dot_dimension_numbers<[1], [1], [0], [0], [0, 0, 1, 0], [], []>} : vector<8x16xbf16>, vector<8x16xbf16>, vector<8x8xf32> -> vector<8x8xf32>
    %cst_49 = arith.constant 2.500000e-01 : f32
    %119 = vector.broadcast %cst_49 : f32 to vector<8x8xf32>
    %120 = arith.mulf %118, %119 : vector<8x8xf32>
    %cst_50 = arith.constant -1.000000e+30 : f32
    %121 = vector.broadcast %cst_50 : f32 to vector<8x8xf32>
    %122 = arith.select %38, %120, %121 : vector<8x8xi1>, vector<8x8xf32>
    %cst_51 = arith.constant dense<0xFF800000> : vector<8xf32>
    %123 = vector.multi_reduction <maximumf>, %122, %cst_51 [1] : vector<8x8xf32> to vector<8xf32>
    %124 = vector.shape_cast %123 : vector<8xf32> to vector<8x1xf32>
    %125 = vector.broadcast %124 : vector<8x1xf32> to vector<8x8xf32>
    %126 = arith.subf %122, %125 : vector<8x8xf32>
    %127 = math.exp %126 : vector<8x8xf32>
    %cst_52 = arith.constant dense<0.000000e+00> : vector<8xf32>
    %128 = vector.multi_reduction <add>, %127, %cst_52 [1] : vector<8x8xf32> to vector<8xf32>
    %129 = vector.shape_cast %128 : vector<8xf32> to vector<8x1xf32>
    %130 = tpu.reciprocal %129 {approx = true} : vector<8x1xf32> -> vector<8x1xf32>
    %131 = vector.broadcast %130 : vector<8x1xf32> to vector<8x8xf32>
    %132 = arith.mulf %127, %131 : vector<8x8xf32>
    %133 = arith.truncf %132 : vector<8x8xf32> to vector<8x8xbf16>
    %cst_53 = arith.constant dense<0.000000e+00> : vector<8x16xf32>
    %134 = tpu.matmul %133, %117, %cst_53 {dimension_numbers = #tpu.dot_dimension_numbers<[1], [0], [0], [1], [0, 0, 1, 1], [], []>} : vector<8x8xbf16>, vector<8x16xbf16>, vector<8x16xf32> -> vector<8x16xf32>
    %135 = arith.truncf %134 : vector<8x16xf32> to vector<8x16xbf16>
    %136 = vector.extract_strided_slice %41 {offsets = [48, 0], sizes = [16, 128], strides = [1, 1]} : vector<64x128xbf16> to vector<16x128xbf16>
    %cst_54 = arith.constant dense<0.000000e+00> : vector<8x128xf32>
    %137 = tpu.matmul %135, %136, %cst_54 {dimension_numbers = #tpu.dot_dimension_numbers<[1], [0], [0], [1], [0, 0, 1, 1], [], []>} : vector<8x16xbf16>, vector<16x128xbf16>, vector<8x128xf32> -> vector<8x128xf32>
    %138 = arith.addf %114, %137 : vector<8x128xf32>
    %139 = arith.addf %138, %5 : vector<8x128xf32>
    %140 = arith.mulf %139, %139 : vector<8x128xf32>
    %cst_55 = arith.constant dense<0.000000e+00> : vector<8xf32>
    %141 = vector.multi_reduction <add>, %140, %cst_55 [1] : vector<8x128xf32> to vector<8xf32>
    %142 = vector.shape_cast %141 : vector<8xf32> to vector<8x1xf32>
    %cst_56 = arith.constant 1.562500e-02 : f32
    %143 = vector.broadcast %cst_56 : f32 to vector<8x1xf32>
    %144 = arith.mulf %142, %143 : vector<8x1xf32>
    %cst_57 = arith.constant 9.99999997E-7 : f32
    %145 = vector.broadcast %cst_57 : f32 to vector<8x1xf32>
    %146 = arith.addf %144, %145 : vector<8x1xf32>
    %147 = math.rsqrt %146 : vector<8x1xf32>
    %148 = vector.broadcast %147 : vector<8x1xf32> to vector<8x128xf32>
    %149 = arith.mulf %139, %148 : vector<8x128xf32>
    %c0_58 = arith.constant 0 : index
    %c0_59 = arith.constant 0 : index
    %c0_60 = arith.constant 0 : index
    %150 = vector.load %arg10[%c0_58, %c0_59, %c0_60] : memref<1x1x128xf32, #tpu.memory_space<vmem>>, vector<1x1x128xf32>
    %151 = vector.shape_cast %150 : vector<1x1x128xf32> to vector<1x128xf32>
    %152 = vector.broadcast %151 : vector<1x128xf32> to vector<8x128xf32>
    %153 = arith.mulf %149, %152 : vector<8x128xf32>
    %154 = tpu.iota {dimensions = array<i32: 1>} : vector<8x8xi32>
    %155 = arith.sitofp %154 : vector<8x8xi32> to vector<8x8xf32>
    %c0_61 = arith.constant 0 : index
    %c0_62 = arith.constant 0 : index
    %c0_63 = arith.constant 0 : index
    %156 = vector.load %arg11[%c0_61, %c0_62, %c0_63] : memref<1x128x8xf32, #tpu.memory_space<vmem>>, vector<1x128x8xf32>
    %157 = vector.shape_cast %156 : vector<1x128x8xf32> to vector<128x8xf32>
    %cst_64 = arith.constant dense<0.000000e+00> : vector<8x8xf32>
    %158 = tpu.matmul %153, %157, %cst_64 {dimension_numbers = #tpu.dot_dimension_numbers<[1], [0], [0], [1], [0, 0, 1, 1], [], []>} : vector<8x128xf32>, vector<128x8xf32>, vector<8x8xf32> -> vector<8x8xf32>
    %cst_65 = arith.constant 4.000000e+00 : f32
    %159 = vector.broadcast %cst_65 : f32 to vector<8x8xf32>
    %160 = arith.cmpf olt, %155, %159 : vector<8x8xf32>
    %cst_66 = arith.constant -1.000000e+30 : f32
    %161 = vector.broadcast %cst_66 : f32 to vector<8x8xf32>
    %162 = arith.select %160, %158, %161 : vector<8x8xi1>, vector<8x8xf32>
    %cst_67 = arith.constant dense<0xFF800000> : vector<8xf32>
    %163 = vector.multi_reduction <maximumf>, %162, %cst_67 [1] : vector<8x8xf32> to vector<8xf32>
    %164 = vector.shape_cast %163 : vector<8xf32> to vector<8x1xf32>
    %165 = vector.broadcast %164 : vector<8x1xf32> to vector<8x8xf32>
    %166 = arith.subf %162, %165 : vector<8x8xf32>
    %167 = math.exp %166 : vector<8x8xf32>
    %cst_68 = arith.constant dense<0.000000e+00> : vector<8xf32>
    %168 = vector.multi_reduction <add>, %167, %cst_68 [1] : vector<8x8xf32> to vector<8xf32>
    %169 = vector.shape_cast %168 : vector<8xf32> to vector<8x1xf32>
    %170 = vector.broadcast %169 : vector<8x1xf32> to vector<8x8xf32>
    %171 = arith.divf %167, %170 : vector<8x8xf32>
    %cst_69 = arith.constant dense<0xFF800000> : vector<8xf32>
    %172 = vector.multi_reduction <maximumf>, %171, %cst_69 [1] : vector<8x8xf32> to vector<8xf32>
    %173 = vector.shape_cast %172 : vector<8xf32> to vector<8x1xf32>
    %174 = vector.broadcast %173 : vector<8x1xf32> to vector<8x8xf32>
    %175 = arith.cmpf oeq, %171, %174 : vector<8x8xf32>
    %176 = arith.andi %175, %160 : vector<8x8xi1>
    %cst_70 = arith.constant 8.000000e+00 : f32
    %177 = vector.broadcast %cst_70 : f32 to vector<8x8xf32>
    %178 = arith.select %176, %155, %177 : vector<8x8xi1>, vector<8x8xf32>
    %cst_71 = arith.constant dense<0x7F800000> : vector<8xf32>
    %179 = vector.multi_reduction <minimumf>, %178, %cst_71 [1] : vector<8x8xf32> to vector<8xf32>
    %180 = vector.shape_cast %179 : vector<8xf32> to vector<8x1xf32>
    %181 = vector.broadcast %180 : vector<8x1xf32> to vector<8x8xf32>
    %182 = arith.cmpf oeq, %155, %181 : vector<8x8xf32>
    %183 = arith.extui %182 : vector<8x8xi1> to vector<8x8xi32>
    %184 = arith.sitofp %183 : vector<8x8xi32> to vector<8x8xf32>
    %185 = vector.broadcast %180 : vector<8x1xf32> to vector<8x8xf32>
    %186 = arith.cmpf oeq, %155, %185 : vector<8x8xf32>
    %cst_72 = arith.constant -1.000000e+00 : f32
    %187 = vector.broadcast %cst_72 : f32 to vector<8x8xf32>
    %188 = arith.select %186, %187, %171 : vector<8x8xi1>, vector<8x8xf32>
    %cst_73 = arith.constant dense<0xFF800000> : vector<8xf32>
    %189 = vector.multi_reduction <maximumf>, %188, %cst_73 [1] : vector<8x8xf32> to vector<8xf32>
    %190 = vector.shape_cast %189 : vector<8xf32> to vector<8x1xf32>
    %191 = vector.broadcast %190 : vector<8x1xf32> to vector<8x8xf32>
    %192 = arith.cmpf oeq, %188, %191 : vector<8x8xf32>
    %193 = arith.andi %192, %160 : vector<8x8xi1>
    %cst_74 = arith.constant 8.000000e+00 : f32
    %194 = vector.broadcast %cst_74 : f32 to vector<8x8xf32>
    %195 = arith.select %193, %155, %194 : vector<8x8xi1>, vector<8x8xf32>
    %cst_75 = arith.constant dense<0x7F800000> : vector<8xf32>
    %196 = vector.multi_reduction <minimumf>, %195, %cst_75 [1] : vector<8x8xf32> to vector<8xf32>
    %197 = vector.shape_cast %196 : vector<8xf32> to vector<8x1xf32>
    %198 = vector.broadcast %197 : vector<8x1xf32> to vector<8x8xf32>
    %199 = arith.cmpf oeq, %155, %198 : vector<8x8xf32>
    %200 = arith.extui %199 : vector<8x8xi1> to vector<8x8xi32>
    %201 = arith.sitofp %200 : vector<8x8xi32> to vector<8x8xf32>
    %202 = vector.broadcast %173 : vector<8x1xf32> to vector<8x8xf32>
    %203 = arith.mulf %202, %184 : vector<8x8xf32>
    %204 = vector.broadcast %190 : vector<8x1xf32> to vector<8x8xf32>
    %205 = arith.mulf %204, %201 : vector<8x8xf32>
    %206 = arith.addf %203, %205 : vector<8x8xf32>
    %cst_76 = arith.constant 4.000000e+00 : f32
    %207 = vector.broadcast %cst_76 : f32 to vector<8x8xf32>
    %208 = arith.cmpf oeq, %155, %207 : vector<8x8xf32>
    %cst_77 = arith.constant 0.000000e+00 : f32
    %209 = vector.broadcast %cst_77 : f32 to vector<8x8xf32>
    %210 = arith.select %208, %158, %209 : vector<8x8xi1>, vector<8x8xf32>
    %cst_78 = arith.constant dense<0.000000e+00> : vector<8xf32>
    %211 = vector.multi_reduction <add>, %210, %cst_78 [1] : vector<8x8xf32> to vector<8xf32>
    %212 = vector.shape_cast %211 : vector<8xf32> to vector<8x1xf32>
    %213 = arith.negf %212 : vector<8x1xf32>
    %214 = math.exp %213 : vector<8x1xf32>
    %cst_79 = arith.constant 1.000000e+00 : f32
    %215 = vector.broadcast %cst_79 : f32 to vector<8x1xf32>
    %216 = arith.addf %215, %214 : vector<8x1xf32>
    %217 = arith.divf %215, %216 : vector<8x1xf32>
    %218 = arith.truncf %153 : vector<8x128xf32> to vector<8x128xbf16>
    %cst_80 = arith.constant 0.000000e+00 : f32
    %219 = vector.broadcast %cst_80 : f32 to vector<8x128xf32>
    %c0_81 = arith.constant 0 : index
    %c0_82 = arith.constant 0 : index
    %c0_83 = arith.constant 0 : index
    %c0_84 = arith.constant 0 : index
    %220 = vector.load %arg12[%c0_81, %c0_82, %c0_83, %c0_84] : memref<1x5x128x128xbf16, #tpu.memory_space<vmem>>, vector<1x1x128x128xbf16>
    %221 = vector.shape_cast %220 : vector<1x1x128x128xbf16> to vector<128x128xbf16>
    %cst_85 = arith.constant dense<0.000000e+00> : vector<8x128xf32>
    %222 = tpu.matmul %218, %221, %cst_85 {dimension_numbers = #tpu.dot_dimension_numbers<[1], [0], [0], [1], [0, 0, 1, 1], [], []>} : vector<8x128xbf16>, vector<128x128xbf16>, vector<8x128xf32> -> vector<8x128xf32>
    %223 = vector.extract_strided_slice %222 {offsets = [0, 0], sizes = [8, 64], strides = [1, 1]} : vector<8x128xf32> to vector<8x64xf32>
    %224 = arith.negf %223 : vector<8x64xf32>
    %225 = math.exp %224 : vector<8x64xf32>
    %cst_86 = arith.constant 1.000000e+00 : f32
    %226 = vector.broadcast %cst_86 : f32 to vector<8x64xf32>
    %227 = arith.addf %226, %225 : vector<8x64xf32>
    %228 = arith.divf %226, %227 : vector<8x64xf32>
    %229 = arith.mulf %223, %228 : vector<8x64xf32>
    %230 = vector.extract_strided_slice %222 {offsets = [0, 64], sizes = [8, 64], strides = [1, 1]} : vector<8x128xf32> to vector<8x64xf32>
    %231 = arith.mulf %229, %230 : vector<8x64xf32>
    %232 = arith.truncf %231 : vector<8x64xf32> to vector<8x64xbf16>
    %c0_87 = arith.constant 0 : index
    %c0_88 = arith.constant 0 : index
    %c0_89 = arith.constant 0 : index
    %c0_90 = arith.constant 0 : index
    %233 = vector.load %arg13[%c0_87, %c0_88, %c0_89, %c0_90] : memref<1x5x64x128xbf16, #tpu.memory_space<vmem>>, vector<1x1x64x128xbf16>
    %234 = vector.shape_cast %233 : vector<1x1x64x128xbf16> to vector<64x128xbf16>
    %cst_91 = arith.constant dense<0.000000e+00> : vector<8x128xf32>
    %235 = tpu.matmul %232, %234, %cst_91 {dimension_numbers = #tpu.dot_dimension_numbers<[1], [0], [0], [1], [0, 0, 1, 1], [], []>} : vector<8x64xbf16>, vector<64x128xbf16>, vector<8x128xf32> -> vector<8x128xf32>
    %cst_92 = arith.constant 0.000000e+00 : f32
    %236 = vector.broadcast %cst_92 : f32 to vector<8x8xf32>
    %237 = arith.cmpf oeq, %155, %236 : vector<8x8xf32>
    %cst_93 = arith.constant 0.000000e+00 : f32
    %238 = vector.broadcast %cst_93 : f32 to vector<8x8xf32>
    %239 = arith.select %237, %206, %238 : vector<8x8xi1>, vector<8x8xf32>
    %cst_94 = arith.constant dense<0.000000e+00> : vector<8xf32>
    %240 = vector.multi_reduction <add>, %239, %cst_94 [1] : vector<8x8xf32> to vector<8xf32>
    %241 = vector.shape_cast %240 : vector<8xf32> to vector<8x1xf32>
    %242 = vector.broadcast %241 : vector<8x1xf32> to vector<8x128xf32>
    %243 = arith.mulf %242, %235 : vector<8x128xf32>
    %244 = arith.addf %219, %243 : vector<8x128xf32>
    %c0_95 = arith.constant 0 : index
    %c1 = arith.constant 1 : index
    %c0_96 = arith.constant 0 : index
    %c0_97 = arith.constant 0 : index
    %245 = vector.load %arg12[%c0_95, %c1, %c0_96, %c0_97] : memref<1x5x128x128xbf16, #tpu.memory_space<vmem>>, vector<1x1x128x128xbf16>
    %246 = vector.shape_cast %245 : vector<1x1x128x128xbf16> to vector<128x128xbf16>
    %cst_98 = arith.constant dense<0.000000e+00> : vector<8x128xf32>
    %247 = tpu.matmul %218, %246, %cst_98 {dimension_numbers = #tpu.dot_dimension_numbers<[1], [0], [0], [1], [0, 0, 1, 1], [], []>} : vector<8x128xbf16>, vector<128x128xbf16>, vector<8x128xf32> -> vector<8x128xf32>
    %248 = vector.extract_strided_slice %247 {offsets = [0, 0], sizes = [8, 64], strides = [1, 1]} : vector<8x128xf32> to vector<8x64xf32>
    %249 = arith.negf %248 : vector<8x64xf32>
    %250 = math.exp %249 : vector<8x64xf32>
    %cst_99 = arith.constant 1.000000e+00 : f32
    %251 = vector.broadcast %cst_99 : f32 to vector<8x64xf32>
    %252 = arith.addf %251, %250 : vector<8x64xf32>
    %253 = arith.divf %251, %252 : vector<8x64xf32>
    %254 = arith.mulf %248, %253 : vector<8x64xf32>
    %255 = vector.extract_strided_slice %247 {offsets = [0, 64], sizes = [8, 64], strides = [1, 1]} : vector<8x128xf32> to vector<8x64xf32>
    %256 = arith.mulf %254, %255 : vector<8x64xf32>
    %257 = arith.truncf %256 : vector<8x64xf32> to vector<8x64xbf16>
    %c0_100 = arith.constant 0 : index
    %c1_101 = arith.constant 1 : index
    %c0_102 = arith.constant 0 : index
    %c0_103 = arith.constant 0 : index
    %258 = vector.load %arg13[%c0_100, %c1_101, %c0_102, %c0_103] : memref<1x5x64x128xbf16, #tpu.memory_space<vmem>>, vector<1x1x64x128xbf16>
    %259 = vector.shape_cast %258 : vector<1x1x64x128xbf16> to vector<64x128xbf16>
    %cst_104 = arith.constant dense<0.000000e+00> : vector<8x128xf32>
    %260 = tpu.matmul %257, %259, %cst_104 {dimension_numbers = #tpu.dot_dimension_numbers<[1], [0], [0], [1], [0, 0, 1, 1], [], []>} : vector<8x64xbf16>, vector<64x128xbf16>, vector<8x128xf32> -> vector<8x128xf32>
    %cst_105 = arith.constant 1.000000e+00 : f32
    %261 = vector.broadcast %cst_105 : f32 to vector<8x8xf32>
    %262 = arith.cmpf oeq, %155, %261 : vector<8x8xf32>
    %cst_106 = arith.constant 0.000000e+00 : f32
    %263 = vector.broadcast %cst_106 : f32 to vector<8x8xf32>
    %264 = arith.select %262, %206, %263 : vector<8x8xi1>, vector<8x8xf32>
    %cst_107 = arith.constant dense<0.000000e+00> : vector<8xf32>
    %265 = vector.multi_reduction <add>, %264, %cst_107 [1] : vector<8x8xf32> to vector<8xf32>
    %266 = vector.shape_cast %265 : vector<8xf32> to vector<8x1xf32>
    %267 = vector.broadcast %266 : vector<8x1xf32> to vector<8x128xf32>
    %268 = arith.mulf %267, %260 : vector<8x128xf32>
    %269 = arith.addf %244, %268 : vector<8x128xf32>
    %c0_108 = arith.constant 0 : index
    %c2 = arith.constant 2 : index
    %c0_109 = arith.constant 0 : index
    %c0_110 = arith.constant 0 : index
    %270 = vector.load %arg12[%c0_108, %c2, %c0_109, %c0_110] : memref<1x5x128x128xbf16, #tpu.memory_space<vmem>>, vector<1x1x128x128xbf16>
    %271 = vector.shape_cast %270 : vector<1x1x128x128xbf16> to vector<128x128xbf16>
    %cst_111 = arith.constant dense<0.000000e+00> : vector<8x128xf32>
    %272 = tpu.matmul %218, %271, %cst_111 {dimension_numbers = #tpu.dot_dimension_numbers<[1], [0], [0], [1], [0, 0, 1, 1], [], []>} : vector<8x128xbf16>, vector<128x128xbf16>, vector<8x128xf32> -> vector<8x128xf32>
    %273 = vector.extract_strided_slice %272 {offsets = [0, 0], sizes = [8, 64], strides = [1, 1]} : vector<8x128xf32> to vector<8x64xf32>
    %274 = arith.negf %273 : vector<8x64xf32>
    %275 = math.exp %274 : vector<8x64xf32>
    %cst_112 = arith.constant 1.000000e+00 : f32
    %276 = vector.broadcast %cst_112 : f32 to vector<8x64xf32>
    %277 = arith.addf %276, %275 : vector<8x64xf32>
    %278 = arith.divf %276, %277 : vector<8x64xf32>
    %279 = arith.mulf %273, %278 : vector<8x64xf32>
    %280 = vector.extract_strided_slice %272 {offsets = [0, 64], sizes = [8, 64], strides = [1, 1]} : vector<8x128xf32> to vector<8x64xf32>
    %281 = arith.mulf %279, %280 : vector<8x64xf32>
    %282 = arith.truncf %281 : vector<8x64xf32> to vector<8x64xbf16>
    %c0_113 = arith.constant 0 : index
    %c2_114 = arith.constant 2 : index
    %c0_115 = arith.constant 0 : index
    %c0_116 = arith.constant 0 : index
    %283 = vector.load %arg13[%c0_113, %c2_114, %c0_115, %c0_116] : memref<1x5x64x128xbf16, #tpu.memory_space<vmem>>, vector<1x1x64x128xbf16>
    %284 = vector.shape_cast %283 : vector<1x1x64x128xbf16> to vector<64x128xbf16>
    %cst_117 = arith.constant dense<0.000000e+00> : vector<8x128xf32>
    %285 = tpu.matmul %282, %284, %cst_117 {dimension_numbers = #tpu.dot_dimension_numbers<[1], [0], [0], [1], [0, 0, 1, 1], [], []>} : vector<8x64xbf16>, vector<64x128xbf16>, vector<8x128xf32> -> vector<8x128xf32>
    %cst_118 = arith.constant 2.000000e+00 : f32
    %286 = vector.broadcast %cst_118 : f32 to vector<8x8xf32>
    %287 = arith.cmpf oeq, %155, %286 : vector<8x8xf32>
    %cst_119 = arith.constant 0.000000e+00 : f32
    %288 = vector.broadcast %cst_119 : f32 to vector<8x8xf32>
    %289 = arith.select %287, %206, %288 : vector<8x8xi1>, vector<8x8xf32>
    %cst_120 = arith.constant dense<0.000000e+00> : vector<8xf32>
    %290 = vector.multi_reduction <add>, %289, %cst_120 [1] : vector<8x8xf32> to vector<8xf32>
    %291 = vector.shape_cast %290 : vector<8xf32> to vector<8x1xf32>
    %292 = vector.broadcast %291 : vector<8x1xf32> to vector<8x128xf32>
    %293 = arith.mulf %292, %285 : vector<8x128xf32>
    %294 = arith.addf %269, %293 : vector<8x128xf32>
    %c0_121 = arith.constant 0 : index
    %c3 = arith.constant 3 : index
    %c0_122 = arith.constant 0 : index
    %c0_123 = arith.constant 0 : index
    %295 = vector.load %arg12[%c0_121, %c3, %c0_122, %c0_123] : memref<1x5x128x128xbf16, #tpu.memory_space<vmem>>, vector<1x1x128x128xbf16>
    %296 = vector.shape_cast %295 : vector<1x1x128x128xbf16> to vector<128x128xbf16>
    %cst_124 = arith.constant dense<0.000000e+00> : vector<8x128xf32>
    %297 = tpu.matmul %218, %296, %cst_124 {dimension_numbers = #tpu.dot_dimension_numbers<[1], [0], [0], [1], [0, 0, 1, 1], [], []>} : vector<8x128xbf16>, vector<128x128xbf16>, vector<8x128xf32> -> vector<8x128xf32>
    %298 = vector.extract_strided_slice %297 {offsets = [0, 0], sizes = [8, 64], strides = [1, 1]} : vector<8x128xf32> to vector<8x64xf32>
    %299 = arith.negf %298 : vector<8x64xf32>
    %300 = math.exp %299 : vector<8x64xf32>
    %cst_125 = arith.constant 1.000000e+00 : f32
    %301 = vector.broadcast %cst_125 : f32 to vector<8x64xf32>
    %302 = arith.addf %301, %300 : vector<8x64xf32>
    %303 = arith.divf %301, %302 : vector<8x64xf32>
    %304 = arith.mulf %298, %303 : vector<8x64xf32>
    %305 = vector.extract_strided_slice %297 {offsets = [0, 64], sizes = [8, 64], strides = [1, 1]} : vector<8x128xf32> to vector<8x64xf32>
    %306 = arith.mulf %304, %305 : vector<8x64xf32>
    %307 = arith.truncf %306 : vector<8x64xf32> to vector<8x64xbf16>
    %c0_126 = arith.constant 0 : index
    %c3_127 = arith.constant 3 : index
    %c0_128 = arith.constant 0 : index
    %c0_129 = arith.constant 0 : index
    %308 = vector.load %arg13[%c0_126, %c3_127, %c0_128, %c0_129] : memref<1x5x64x128xbf16, #tpu.memory_space<vmem>>, vector<1x1x64x128xbf16>
    %309 = vector.shape_cast %308 : vector<1x1x64x128xbf16> to vector<64x128xbf16>
    %cst_130 = arith.constant dense<0.000000e+00> : vector<8x128xf32>
    %310 = tpu.matmul %307, %309, %cst_130 {dimension_numbers = #tpu.dot_dimension_numbers<[1], [0], [0], [1], [0, 0, 1, 1], [], []>} : vector<8x64xbf16>, vector<64x128xbf16>, vector<8x128xf32> -> vector<8x128xf32>
    %cst_131 = arith.constant 3.000000e+00 : f32
    %311 = vector.broadcast %cst_131 : f32 to vector<8x8xf32>
    %312 = arith.cmpf oeq, %155, %311 : vector<8x8xf32>
    %cst_132 = arith.constant 0.000000e+00 : f32
    %313 = vector.broadcast %cst_132 : f32 to vector<8x8xf32>
    %314 = arith.select %312, %206, %313 : vector<8x8xi1>, vector<8x8xf32>
    %cst_133 = arith.constant dense<0.000000e+00> : vector<8xf32>
    %315 = vector.multi_reduction <add>, %314, %cst_133 [1] : vector<8x8xf32> to vector<8xf32>
    %316 = vector.shape_cast %315 : vector<8xf32> to vector<8x1xf32>
    %317 = vector.broadcast %316 : vector<8x1xf32> to vector<8x128xf32>
    %318 = arith.mulf %317, %310 : vector<8x128xf32>
    %319 = arith.addf %294, %318 : vector<8x128xf32>
    %c0_134 = arith.constant 0 : index
    %c4 = arith.constant 4 : index
    %c0_135 = arith.constant 0 : index
    %c0_136 = arith.constant 0 : index
    %320 = vector.load %arg12[%c0_134, %c4, %c0_135, %c0_136] : memref<1x5x128x128xbf16, #tpu.memory_space<vmem>>, vector<1x1x128x128xbf16>
    %321 = vector.shape_cast %320 : vector<1x1x128x128xbf16> to vector<128x128xbf16>
    %cst_137 = arith.constant dense<0.000000e+00> : vector<8x128xf32>
    %322 = tpu.matmul %218, %321, %cst_137 {dimension_numbers = #tpu.dot_dimension_numbers<[1], [0], [0], [1], [0, 0, 1, 1], [], []>} : vector<8x128xbf16>, vector<128x128xbf16>, vector<8x128xf32> -> vector<8x128xf32>
    %323 = vector.extract_strided_slice %322 {offsets = [0, 0], sizes = [8, 64], strides = [1, 1]} : vector<8x128xf32> to vector<8x64xf32>
    %324 = arith.negf %323 : vector<8x64xf32>
    %325 = math.exp %324 : vector<8x64xf32>
    %cst_138 = arith.constant 1.000000e+00 : f32
    %326 = vector.broadcast %cst_138 : f32 to vector<8x64xf32>
    %327 = arith.addf %326, %325 : vector<8x64xf32>
    %328 = arith.divf %326, %327 : vector<8x64xf32>
    %329 = arith.mulf %323, %328 : vector<8x64xf32>
    %330 = vector.extract_strided_slice %322 {offsets = [0, 64], sizes = [8, 64], strides = [1, 1]} : vector<8x128xf32> to vector<8x64xf32>
    %331 = arith.mulf %329, %330 : vector<8x64xf32>
    %332 = arith.truncf %331 : vector<8x64xf32> to vector<8x64xbf16>
    %c0_139 = arith.constant 0 : index
    %c4_140 = arith.constant 4 : index
    %c0_141 = arith.constant 0 : index
    %c0_142 = arith.constant 0 : index
    %333 = vector.load %arg13[%c0_139, %c4_140, %c0_141, %c0_142] : memref<1x5x64x128xbf16, #tpu.memory_space<vmem>>, vector<1x1x64x128xbf16>
    %334 = vector.shape_cast %333 : vector<1x1x64x128xbf16> to vector<64x128xbf16>
    %cst_143 = arith.constant dense<0.000000e+00> : vector<8x128xf32>
    %335 = tpu.matmul %332, %334, %cst_143 {dimension_numbers = #tpu.dot_dimension_numbers<[1], [0], [0], [1], [0, 0, 1, 1], [], []>} : vector<8x64xbf16>, vector<64x128xbf16>, vector<8x128xf32> -> vector<8x128xf32>
    %336 = vector.broadcast %217 : vector<8x1xf32> to vector<8x128xf32>
    %337 = arith.mulf %336, %335 : vector<8x128xf32>
    %338 = arith.addf %319, %337 : vector<8x128xf32>
    %c0_144 = arith.constant 0 : index
    %c0_145 = arith.constant 0 : index
    %339 = vector.load %arg15[%c0_144, %c0_145] : memref<8x128xf32, #tpu.memory_space<vmem>>, vector<8x128xf32>
    tpu.vector_store %arg15[%c0_144, %c0_145], %338 {strides = array<i32>} : memref<8x128xf32, #tpu.memory_space<vmem>>, vector<8x128xf32>,
    %c0_146 = arith.constant 0 : index
    %c0_147 = arith.constant 0 : index
    %340 = vector.load %arg16[%c0_146, %c0_147] : memref<8x128xf32, #tpu.memory_space<vmem>>, vector<8x128xf32>
    tpu.vector_store %arg16[%c0_146, %c0_147], %139 {strides = array<i32>} : memref<8x128xf32, #tpu.memory_space<vmem>>, vector<8x128xf32>,
    %c1_i32 = arith.constant 1 : i32
    %341 = arith.cmpi eq, %arg0, %c1_i32 : i32
    %342 = arith.extui %341 : i1 to i32
    %c0_i32_148 = arith.constant 0 : i32
    %343 = arith.cmpi ne, %342, %c0_i32_148 : i32
    scf.if %343 {
      %344 = arith.addf %338, %139 : vector<8x128xf32>
      %345 = arith.mulf %344, %344 : vector<8x128xf32>
      %cst_149 = arith.constant dense<0.000000e+00> : vector<8xf32>
      %346 = vector.multi_reduction <add>, %345, %cst_149 [1] : vector<8x128xf32> to vector<8xf32>
      %347 = vector.shape_cast %346 : vector<8xf32> to vector<8x1xf32>
      %cst_150 = arith.constant 1.562500e-02 : f32
      %348 = vector.broadcast %cst_150 : f32 to vector<8x1xf32>
      %349 = arith.mulf %347, %348 : vector<8x1xf32>
      %cst_151 = arith.constant 9.99999997E-7 : f32
      %350 = vector.broadcast %cst_151 : f32 to vector<8x1xf32>
      %351 = arith.addf %349, %350 : vector<8x1xf32>
      %352 = math.rsqrt %351 : vector<8x1xf32>
      %353 = vector.broadcast %352 : vector<8x1xf32> to vector<8x128xf32>
      %354 = arith.mulf %344, %353 : vector<8x128xf32>
      %c0_152 = arith.constant 0 : index
      %c0_153 = arith.constant 0 : index
      %355 = vector.load %arg5[%c0_152, %c0_153] : memref<1x128xf32, #tpu.memory_space<vmem>>, vector<1x128xf32>
      %356 = vector.broadcast %355 : vector<1x128xf32> to vector<8x128xf32>
      %357 = arith.mulf %354, %356 : vector<8x128xf32>
      %c0_154 = arith.constant 0 : index
      %c0_155 = arith.constant 0 : index
      %358 = vector.load %arg14[%c0_154, %c0_155] : memref<8x128xf32, #tpu.memory_space<vmem>>, vector<8x128xf32>
      tpu.vector_store %arg14[%c0_154, %c0_155], %357 {strides = array<i32>} : memref<8x128xf32, #tpu.memory_space<vmem>>, vector<8x128xf32>,
    } else {
    }
    return
  }
  func.func @transform_0(%arg0: i32) -> (i32, i32) {
    %c0_i32 = arith.constant 0 : i32
    %c0_i32_0 = arith.constant 0 : i32
    %c0_i32_1 = arith.constant 0 : i32
    return %c0_i32, %c0_i32_0 : i32, i32
  }
  func.func @transform_1(%arg0: i32) -> (i32, i32) {
    %c0_i32 = arith.constant 0 : i32
    %c0_i32_0 = arith.constant 0 : i32
    %c0_i32_1 = arith.constant 0 : i32
    return %c0_i32, %c0_i32_0 : i32, i32
  }
  func.func @transform_2(%arg0: i32) -> (i32, i32) {
    %c0_i32 = arith.constant 0 : i32
    %c0_i32_0 = arith.constant 0 : i32
    %c0_i32_1 = arith.constant 0 : i32
    return %c0_i32, %c0_i32_0 : i32, i32
  }
  func.func @transform_3(%arg0: i32) -> (i32, i32) {
    %c0_i32 = arith.constant 0 : i32
    %c0_i32_0 = arith.constant 0 : i32
    %c0_i32_1 = arith.constant 0 : i32
    return %c0_i32, %c0_i32_0 : i32, i32
  }
  func.func @transform_4(%arg0: i32) -> (i32, i32) {
    %c0_i32 = arith.constant 0 : i32
    %c0_i32_0 = arith.constant 0 : i32
    %c0_i32_1 = arith.constant 0 : i32
    return %c0_i32, %c0_i32_0 : i32, i32
  }
  func.func @transform_5(%arg0: i32) -> (i32, i32, i32) {
    %c0_i32 = arith.constant 0 : i32
    %c0_i32_0 = arith.constant 0 : i32
    %c0_i32_1 = arith.constant 0 : i32
    return %arg0, %c0_i32, %c0_i32_0 : i32, i32, i32
  }
  func.func @transform_6(%arg0: i32) -> (i32, i32, i32) {
    %c0_i32 = arith.constant 0 : i32
    %c0_i32_0 = arith.constant 0 : i32
    %c0_i32_1 = arith.constant 0 : i32
    return %arg0, %c0_i32, %c0_i32_0 : i32, i32, i32
  }
  func.func @transform_7(%arg0: i32) -> (i32, i32, i32) {
    %c0_i32 = arith.constant 0 : i32
    %c0_i32_0 = arith.constant 0 : i32
    %c0_i32_1 = arith.constant 0 : i32
    return %arg0, %c0_i32, %c0_i32_0 : i32, i32, i32
  }
  func.func @transform_8(%arg0: i32) -> (i32, i32, i32) {
    %c0_i32 = arith.constant 0 : i32
    %c0_i32_0 = arith.constant 0 : i32
    %c0_i32_1 = arith.constant 0 : i32
    return %arg0, %c0_i32, %c0_i32_0 : i32, i32, i32
  }
  func.func @transform_9(%arg0: i32) -> (i32, i32, i32) {
    %c0_i32 = arith.constant 0 : i32
    %c0_i32_0 = arith.constant 0 : i32
    %c0_i32_1 = arith.constant 0 : i32
    return %arg0, %c0_i32, %c0_i32_0 : i32, i32, i32
  }
  func.func @transform_10(%arg0: i32) -> (i32, i32, i32) {
    %c0_i32 = arith.constant 0 : i32
    %c0_i32_0 = arith.constant 0 : i32
    %c0_i32_1 = arith.constant 0 : i32
    return %arg0, %c0_i32, %c0_i32_0 : i32, i32, i32
  }
  func.func @transform_11(%arg0: i32) -> (i32, i32, i32, i32) {
    %c0_i32 = arith.constant 0 : i32
    %c0_i32_0 = arith.constant 0 : i32
    %c0_i32_1 = arith.constant 0 : i32
    %c0_i32_2 = arith.constant 0 : i32
    return %arg0, %c0_i32, %c0_i32_0, %c0_i32_1 : i32, i32, i32, i32
  }
  func.func @transform_12(%arg0: i32) -> (i32, i32, i32, i32) {
    %c0_i32 = arith.constant 0 : i32
    %c0_i32_0 = arith.constant 0 : i32
    %c0_i32_1 = arith.constant 0 : i32
    %c0_i32_2 = arith.constant 0 : i32
    return %arg0, %c0_i32, %c0_i32_0, %c0_i32_1 : i32, i32, i32, i32
  }
  func.func @transform_13(%arg0: i32) -> (i32, i32) {
    %c0_i32 = arith.constant 0 : i32
    %c0_i32_0 = arith.constant 0 : i32
    %c0_i32_1 = arith.constant 0 : i32
    return %c0_i32, %c0_i32_0 : i32, i32
  }
}

</mosaic_0001>

<llo_original>
// kernel: tile.29
$region0: #{tile.29}
  %s0 = inlined_call_operand.vmem [shape: f32[8,2,16], index: 0, kind: input, shape index: {}]
  %s1 = inlined_call_operand.vmem [shape: f32[8,32], index: 1, kind: output, shape index: {}]
  $region1: #{tile.29} parent=0
    #allocation0 [shape = 'u8[32768]{0}', space=vmem, size = 0x8000, scoped, tag = 'scoped mem for input reshape']
    %s3 = ssub.s32 4, 1
    %s4 = scalar_lea.vmem %s0, 14
    %v5 = vld [vmem:[%s4] sm:%s3]
    %s6 = scalar_lea.vmem [#allocation0], 56
    %7 = vst [vmem:[%s6] sm:%s3] %v5
    %s8 = scalar_lea.vmem %s0, 12
    %v9 = vld [vmem:[%s8] sm:%s3]
    %s10 = scalar_lea.vmem [#allocation0], 48
    %11 = vst [vmem:[%s10] sm:%s3] %v9
    %s12 = scalar_lea.vmem %s0, 10
    %v13 = vld [vmem:[%s12] sm:%s3]
    %s14 = scalar_lea.vmem [#allocation0], 40
    %15 = vst [vmem:[%s14] sm:%s3] %v13
    %s16 = scalar_lea.vmem %s0, 8
    %v17 = vld [vmem:[%s16] sm:%s3]
    %s18 = scalar_lea.vmem [#allocation0], 32
    %19 = vst [vmem:[%s18] sm:%s3] %v17
    %s20 = scalar_lea.vmem %s0, 6
    %v21 = vld [vmem:[%s20] sm:%s3]
    %s22 = scalar_lea.vmem [#allocation0], 24
    %23 = vst [vmem:[%s22] sm:%s3] %v21
    %s24 = scalar_lea.vmem %s0, 4
    %v25 = vld [vmem:[%s24] sm:%s3]
    %s26 = scalar_lea.vmem [#allocation0], 16
    %27 = vst [vmem:[%s26] sm:%s3] %v25
    %s28 = scalar_lea.vmem %s0, 2
    %v29 = vld [vmem:[%s28] sm:%s3]
    %s30 = scalar_lea.vmem [#allocation0], 8
    %31 = vst [vmem:[%s30] sm:%s3] %v29
    %v32 = vld [vmem:[%s0] sm:%s3]
    %33 = vst [vmem:[#allocation0] sm:%s3] %v32
    %v34 = vld [vmem:[#allocation0] ss:$8 sm:$0xf]
    %v35 = vld [vmem:[#allocation0] ss:$8 sm:$0xf0]
    %vm36 = vcmask 1047556
    %v37 = vsel %vm36, %v35, %v34
    %vm38 = vcmask 130048
    %39 = vst.msk [vmem:[%s1] sm:$0xff] %vm38, %v37
    %s40 = scalar_lea.vmem [#allocation0], 1
    %v41 = vld [vmem:[%s40] ss:$8 sm:$0xf]
    %s42 = scalar_lea.vmem [#allocation0], 1
    %v43 = vld [vmem:[%s42] ss:$8 sm:$0xf0]
    %vm44 = vcmask 1047556
    %v45 = vsel %vm44, %v43, %v41
    %46 = vrot.lane.b32.xlu0 %v45, 16
    %v47 = vpop.permute.xlu0 %46
    %vm48 = vcmask 261248
    %49 = vst.msk [vmem:[%s1] sm:$0xff] %vm48, %v47

// kernel: tile.34
$region0: #{tile.34}
  %s0 = inlined_call_operand.vmem [shape: f32[8,4,16], index: 0, kind: input, shape index: {}]
  %s1 = inlined_call_operand.vmem [shape: f32[8,64], index: 1, kind: output, shape index: {}]
  $region1: #{tile.34} parent=0
    #allocation0 [shape = 'u8[32768]{0}', space=vmem, size = 0x8000, scoped, tag = 'scoped mem for input reshape']
    %s3 = ssub.s32 16, 1
    %s4 = scalar_lea.vmem %s0, 28
    %v5 = vld [vmem:[%s4] sm:%s3]
    %s6 = scalar_lea.vmem [#allocation0], 56
    %7 = vst [vmem:[%s6] sm:%s3] %v5
    %s8 = scalar_lea.vmem %s0, 24
    %v9 = vld [vmem:[%s8] sm:%s3]
    %s10 = scalar_lea.vmem [#allocation0], 48
    %11 = vst [vmem:[%s10] sm:%s3] %v9
    %s12 = scalar_lea.vmem %s0, 20
    %v13 = vld [vmem:[%s12] sm:%s3]
    %s14 = scalar_lea.vmem [#allocation0], 40
    %15 = vst [vmem:[%s14] sm:%s3] %v13
    %s16 = scalar_lea.vmem %s0, 16
    %v17 = vld [vmem:[%s16] sm:%s3]
    %s18 = scalar_lea.vmem [#allocation0], 32
    %19 = vst [vmem:[%s18] sm:%s3] %v17
    %s20 = scalar_lea.vmem %s0, 12
    %v21 = vld [vmem:[%s20] sm:%s3]
    %s22 = scalar_lea.vmem [#allocation0], 24
    %23 = vst [vmem:[%s22] sm:%s3] %v21
    %s24 = scalar_lea.vmem %s0, 8
    %v25 = vld [vmem:[%s24] sm:%s3]
    %s26 = scalar_lea.vmem [#allocation0], 16
    %27 = vst [vmem:[%s26] sm:%s3] %v25
    %s28 = scalar_lea.vmem %s0, 4
    %v29 = vld [vmem:[%s28] sm:%s3]
    %s30 = scalar_lea.vmem [#allocation0], 8
    %31 = vst [vmem:[%s30] sm:%s3] %v29
    %v32 = vld [vmem:[%s0] sm:%s3]
    %33 = vst [vmem:[#allocation0] sm:%s3] %v32
    %v34 = vld [vmem:[#allocation0] ss:$8 sm:$0xf]
    %v35 = vld [vmem:[#allocation0] ss:$8 sm:$0xf0]
    %vm36 = vcmask 1047556
    %v37 = vsel %vm36, %v35, %v34
    %vm38 = vcmask 130048
    %39 = vst.msk [vmem:[%s1] sm:$0xff] %vm38, %v37
    %s40 = scalar_lea.vmem [#allocation0], 3
    %v41 = vld [vmem:[%s40] ss:$8 sm:$0xf]
    %s42 = scalar_lea.vmem [#allocation0], 3
    %v43 = vld [vmem:[%s42] ss:$8 sm:$0xf0]
    %vm44 = vcmask 1047556
    %v45 = vsel %vm44, %v43, %v41
    %46 = vrot.lane.b32.xlu0 %v45, 48
    %v47 = vpop.permute.xlu0 %46
    %vm48 = vcmask 523648
    %49 = vst.msk [vmem:[%s1] sm:$0xff] %vm48, %v47
    %s50 = scalar_lea.vmem [#allocation0], 2
    %v51 = vld [vmem:[%s50] ss:$8 sm:$0xf]
    %s52 = scalar_lea.vmem [#allocation0], 2
    %v53 = vld [vmem:[%s52] ss:$8 sm:$0xf0]
    %vm54 = vcmask 1047556
    %v55 = vsel %vm54, %v53, %v51
    %56 = vrot.lane.b32.xlu0 %v55, 32
    %v57 = vpop.permute.xlu0 %56
    %vm58 = vcmask 392448
    %59 = vst.msk [vmem:[%s1] sm:$0xff] %vm58, %v57
    %s60 = scalar_lea.vmem [#allocation0], 1
    %v61 = vld [vmem:[%s60] ss:$8 sm:$0xf]
    %s62 = scalar_lea.vmem [#allocation0], 1
    %v63 = vld [vmem:[%s62] ss:$8 sm:$0xf0]
    %vm64 = vcmask 1047556
    %v65 = vsel %vm64, %v63, %v61
    %66 = vrot.lane.b32.xlu0 %v65, 16
    %v67 = vpop.permute.xlu0 %66
    %vm68 = vcmask 261248
    %69 = vst.msk [vmem:[%s1] sm:$0xff] %vm68, %v67

// kernel: model_forward.1
$region0: #{model_forward.1}
  #allocation0 [shape = 'u32[]', space=smem, size = 0x4, offset = 0x4, fixed_abs, tag = 'smem constant byte address 0x4 - core index']
  #allocation1 [shape = 'u32[72,128]{1,0:T(1,128)}', space=vmem, size = 0x9000, scoped, tag = 'internal scratch']
  #allocation2 [shape = 'f32[8,128]{1,0:T(8,128)}', space=vmem, size = 0x1000, scoped, tag = 'scratch operand']
  #allocation3 [shape = 'f32[8,128]{1,0:T(8,128)}', space=vmem, size = 0x1000, scoped, tag = 'scratch operand']
  %s0 = inlined_call_operand.vmem [shape: f32[8,128], index: 0, kind: input, shape index: {}]
  %s1 = inlined_call_operand.vmem [shape: f32[8,128], index: 1, kind: input, shape index: {}]
  %s2 = inlined_call_operand.vmem [shape: f32[8,128], index: 2, kind: input, shape index: {}]
  %s3 = inlined_call_operand.vmem [shape: bf16[128,128], index: 3, kind: input, shape index: {}]
  %s4 = inlined_call_operand.vmem [shape: f32[1,128], index: 4, kind: input, shape index: {}]
  %s5 = inlined_call_operand.vmem [shape: f32[2,1,128], index: 5, kind: input, shape index: {}]
  %s6 = inlined_call_operand.vmem [shape: bf16[2,128,128], index: 6, kind: input, shape index: {}]
  %s7 = inlined_call_operand.vmem [shape: f32[2,1,128], index: 7, kind: input, shape index: {}]
  %s8 = inlined_call_operand.vmem [shape: bf16[2,64,128], index: 8, kind: input, shape index: {}]
  %s9 = inlined_call_operand.vmem [shape: f32[2,1,128], index: 9, kind: input, shape index: {}]
  %s10 = inlined_call_operand.vmem [shape: f32[2,128,8], index: 10, kind: input, shape index: {}]
  %s11 = inlined_call_operand.hbm [shape: bf16[2,5,128,128], index: 11, kind: input, shape index: {}]
  %s12 = inlined_call_operand.vmem [shape: bf16[2,5,64,128], index: 12, kind: input, shape index: {}]
  %s13 = inlined_call_operand.hbm [shape: f32[8,128], index: 13, kind: output, shape index: {}]
  %s14 = sld [smem:[#allocation0]]
  $region97: #{model_forward.1} parent=0
    _
  %s16 = ssub.s32 1, %s14
  %s17 = scalar_select 0, %s16, %s14
  $region1: #{model_forward.1} parent=0
    #allocation4 [shape = 'u8[327680]{0}', space=vmem, size = 0x50000, scoped, tag = 'input window, operand 11']
    #allocation5 [shape = 's32[2]{0}', space=sflag, size = 0x8, scoped, tag = 'scoped memory for model_forward.1']
    #allocation6 [shape = 's32[2]{0}', space=sflag, size = 0x8, scoped, tag = 'scoped memory for model_forward.1']
    #allocation7 [shape = 'u8[4096]{0}', space=vmem, size = 0x1000, scoped, tag = 'output window, operand 0, single buffered']
    %18 = vsyncpa [#allocation5], 0
    %s19 = scalar_lea.sflag [#allocation5], 1
    %20 = vsyncpa %s19, 0
    %21 = vsyncpa [#allocation6], 0
    loop: start=0, step=1, limit=4
    $region2: #{model_forward.1} parent=1 // loop_pre_header
      _
    $region3: #{model_forward.1} parent=1 // loop_header
      %s23 = sphi 0, %s27
      %p24 = scmp.ge.s32.totalorder %s23, 4
      %s31 = sphi 0, %s31
      %s33 = sphi 0, %s31
      %s34 = sphi 0, %s33
      %s48 = sphi 0, %s34
      %s52 = sphi 0, %s52
      %s54 = sphi 0, %s52
      %s55 = sphi 0, %s54
      %s69 = sphi 0, %s55
      %s73 = sphi 0, %s73
      %s75 = sphi 0, %s73
      %s76 = sphi 0, %s75
      %s90 = sphi 0, %s76
      %s94 = sphi 0, %s94
      %s96 = sphi 0, %s94
      %s97 = sphi 0, %s96
      %s111 = sphi 0, %s97
      %s115 = sphi 0, %s115
      %s117 = sphi 0, %s115
      %s118 = sphi 0, %s117
      %s132 = sphi 0, %s118
      %s138 = sphi 0, %s140
      %s141 = sphi 0, %s138
      %s142 = sphi 0, %s141
      %s158 = sphi 0, %s142
      %s164 = sphi 0, %s166
      %s167 = sphi 0, %s164
      %s168 = sphi 0, %s167
      %s184 = sphi 0, %s168
      %s190 = sphi 0, %s192
      %s193 = sphi 0, %s190
      %s194 = sphi 0, %s193
      %s210 = sphi 0, %s194
      %s216 = sphi 0, %s218
      %s219 = sphi 0, %s216
      %s220 = sphi 0, %s219
      %s236 = sphi 0, %s220
      %s242 = sphi 0, %s244
      %s245 = sphi 0, %s242
      %s246 = sphi 0, %s245
      %s262 = sphi 0, %s246
      %s268 = sphi 0, %s270
      %s271 = sphi 0, %s268
      %s272 = sphi 0, %s271
      %s288 = sphi 0, %s272
      %s294 = sphi 0, %s296
      %s297 = sphi 0, %s294
      %s298 = sphi 0, %s297
      %s314 = sphi 0, %s298
      %s320 = sphi 0, %s322
      %s323 = sphi 0, %s320
      %s324 = sphi 0, %s323
      %s340 = sphi 0, %s324
      %s344 = sphi 0, %s344
      %s346 = sphi 0, %s344
      %s347 = sphi 0, %s346
      %s361 = sphi 0, %s347
    $region4: #{model_forward.1} parent=1 // loop_header_branch
      %26 = sbr.rel (%p24) target = $region8
    $region5: #{model_forward.1} parent=1 // loop_body
      %s28 = ssub.s32 %s23, 1
      %s29 = ssub.s32 %s23, 2
      %s30 = sadd.s32 %s23, 1
      %s32 = sadd.s32 %s31, 1
      %p35 = scmp.eq.s32.totalorder %s23, 1
      %p36 = scmp.ne.s32.totalorder %s31, %s33
      %p37 = scmp.eq.s32.totalorder %s23, 0
      %p38 = por %p36, %p37
      %p39 = scmp.ne.s32.totalorder %s31, %s33
      %p40 = scmp.eq.s32.totalorder %s28, 1
      %p41 = por %p39, %p40
      %p42 = scmp.ne.s32.totalorder %s33, %s34
      %p43 = scmp.eq.s32.totalorder %s28, 0
      %p44 = por %p42, %p43
      %p45 = scmp.ne.s32.totalorder %s33, %s34
      %p46 = scmp.eq.s32.totalorder %s29, 1
      %p47 = por %p45, %p46
      %p49 = scmp.ne.s32.totalorder %s34, %s48
      %p50 = scmp.eq.s32.totalorder %s29, 0
      %p51 = por %p49, %p50
      %s53 = sadd.s32 %s52, 1
      %p56 = scmp.eq.s32.totalorder %s23, 1
      %p57 = scmp.ne.s32.totalorder %s52, %s54
      %p58 = scmp.eq.s32.totalorder %s23, 0
      %p59 = por %p57, %p58
      %p60 = scmp.ne.s32.totalorder %s52, %s54
      %p61 = scmp.eq.s32.totalorder %s28, 1
      %p62 = por %p60, %p61
      %p63 = scmp.ne.s32.totalorder %s54, %s55
      %p64 = scmp.eq.s32.totalorder %s28, 0
      %p65 = por %p63, %p64
      %p66 = scmp.ne.s32.totalorder %s54, %s55
      %p67 = scmp.eq.s32.totalorder %s29, 1
      %p68 = por %p66, %p67
      %p70 = scmp.ne.s32.totalorder %s55, %s69
      %p71 = scmp.eq.s32.totalorder %s29, 0
      %p72 = por %p70, %p71
      %s74 = sadd.s32 %s73, 1
      %p77 = scmp.eq.s32.totalorder %s23, 1
      %p78 = scmp.ne.s32.totalorder %s73, %s75
      %p79 = scmp.eq.s32.totalorder %s23, 0
      %p80 = por %p78, %p79
      %p81 = scmp.ne.s32.totalorder %s73, %s75
      %p82 = scmp.eq.s32.totalorder %s28, 1
      %p83 = por %p81, %p82
      %p84 = scmp.ne.s32.totalorder %s75, %s76
      %p85 = scmp.eq.s32.totalorder %s28, 0
      %p86 = por %p84, %p85
      %p87 = scmp.ne.s32.totalorder %s75, %s76
      %p88 = scmp.eq.s32.totalorder %s29, 1
      %p89 = por %p87, %p88
      %p91 = scmp.ne.s32.totalorder %s76, %s90
      %p92 = scmp.eq.s32.totalorder %s29, 0
      %p93 = por %p91, %p92
      %s95 = sadd.s32 %s94, 1
      %p98 = scmp.eq.s32.totalorder %s23, 1
      %p99 = scmp.ne.s32.totalorder %s94, %s96
      %p100 = scmp.eq.s32.totalorder %s23, 0
      %p101 = por %p99, %p100
      %p102 = scmp.ne.s32.totalorder %s94, %s96
      %p103 = scmp.eq.s32.totalorder %s28, 1
      %p104 = por %p102, %p103
      %p105 = scmp.ne.s32.totalorder %s96, %s97
      %p106 = scmp.eq.s32.totalorder %s28, 0
      %p107 = por %p105, %p106
      %p108 = scmp.ne.s32.totalorder %s96, %s97
      %p109 = scmp.eq.s32.totalorder %s29, 1
      %p110 = por %p108, %p109
      %p112 = scmp.ne.s32.totalorder %s97, %s111
      %p113 = scmp.eq.s32.totalorder %s29, 0
      %p114 = por %p112, %p113
      %s116 = sadd.s32 %s115, 1
      %p119 = scmp.eq.s32.totalorder %s23, 1
      %p120 = scmp.ne.s32.totalorder %s115, %s117
      %p121 = scmp.eq.s32.totalorder %s23, 0
      %p122 = por %p120, %p121
      %p123 = scmp.ne.s32.totalorder %s115, %s117
      %p124 = scmp.eq.s32.totalorder %s28, 1
      %p125 = por %p123, %p124
      %p126 = scmp.ne.s32.totalorder %s117, %s118
      %p127 = scmp.eq.s32.totalorder %s28, 0
      %p128 = por %p126, %p127
      %p129 = scmp.ne.s32.totalorder %s117, %s118
      %p130 = scmp.eq.s32.totalorder %s29, 1
      %p131 = por %p129, %p130
      %p133 = scmp.ne.s32.totalorder %s118, %s132
      %p134 = scmp.eq.s32.totalorder %s29, 0
      %p135 = por %p133, %p134
      %s136 = ssub.s32 %s23, %s30
      %p137 = scmp.eq.s32.totalorder %s136, 0
      %s139 = sadd.s32 %s138, 1
      %s140 = scalar_select %p137, %s138, %s139
      %p143 = pneg %p137
      %p144 = scmp.eq.s32.totalorder %s23, 1
      %p145 = por %p143, %p144
      %p146 = scmp.ne.s32.totalorder %s138, %s141
      %p147 = scmp.eq.s32.totalorder %s23, 0
      %p148 = por %p146, %p147
      %p149 = scmp.ne.s32.totalorder %s138, %s141
      %p150 = scmp.eq.s32.totalorder %s28, 1
      %p151 = por %p149, %p150
      %p152 = scmp.ne.s32.totalorder %s141, %s142
      %p153 = scmp.eq.s32.totalorder %s28, 0
      %p154 = por %p152, %p153
      %p155 = scmp.ne.s32.totalorder %s141, %s142
      %p156 = scmp.eq.s32.totalorder %s29, 1
      %p157 = por %p155, %p156
      %p159 = scmp.ne.s32.totalorder %s142, %s158
      %p160 = scmp.eq.s32.totalorder %s29, 0
      %p161 = por %p159, %p160
      %s162 = ssub.s32 %s23, %s30
      %p163 = scmp.eq.s32.totalorder %s162, 0
      %s165 = sadd.s32 %s164, 1
      %s166 = scalar_select %p163, %s164, %s165
      %p169 = pneg %p163
      %p170 = scmp.eq.s32.totalorder %s23, 1
      %p171 = por %p169, %p170
      %p172 = scmp.ne.s32.totalorder %s164, %s167
      %p173 = scmp.eq.s32.totalorder %s23, 0
      %p174 = por %p172, %p173
      %p175 = scmp.ne.s32.totalorder %s164, %s167
      %p176 = scmp.eq.s32.totalorder %s28, 1
      %p177 = por %p175, %p176
      %p178 = scmp.ne.s32.totalorder %s167, %s168
      %p179 = scmp.eq.s32.totalorder %s28, 0
      %p180 = por %p178, %p179
      %p181 = scmp.ne.s32.totalorder %s167, %s168
      %p182 = scmp.eq.s32.totalorder %s29, 1
      %p183 = por %p181, %p182
      %p185 = scmp.ne.s32.totalorder %s168, %s184
      %p186 = scmp.eq.s32.totalorder %s29, 0
      %p187 = por %p185, %p186
      %s188 = ssub.s32 %s23, %s30
      %p189 = scmp.eq.s32.totalorder %s188, 0
      %s191 = sadd.s32 %s190, 1
      %s192 = scalar_select %p189, %s190, %s191
      %p195 = pneg %p189
      %p196 = scmp.eq.s32.totalorder %s23, 1
      %p197 = por %p195, %p196
      %p198 = scmp.ne.s32.totalorder %s190, %s193
      %p199 = scmp.eq.s32.totalorder %s23, 0
      %p200 = por %p198, %p199
      %p201 = scmp.ne.s32.totalorder %s190, %s193
      %p202 = scmp.eq.s32.totalorder %s28, 1
      %p203 = por %p201, %p202
      %p204 = scmp.ne.s32.totalorder %s193, %s194
      %p205 = scmp.eq.s32.totalorder %s28, 0
      %p206 = por %p204, %p205
      %p207 = scmp.ne.s32.totalorder %s193, %s194
      %p208 = scmp.eq.s32.totalorder %s29, 1
      %p209 = por %p207, %p208
      %p211 = scmp.ne.s32.totalorder %s194, %s210
      %p212 = scmp.eq.s32.totalorder %s29, 0
      %p213 = por %p211, %p212
      %s214 = ssub.s32 %s23, %s30
      %p215 = scmp.eq.s32.totalorder %s214, 0
      %s217 = sadd.s32 %s216, 1
      %s218 = scalar_select %p215, %s216, %s217
      %p221 = pneg %p215
      %p222 = scmp.eq.s32.totalorder %s23, 1
      %p223 = por %p221, %p222
      %p224 = scmp.ne.s32.totalorder %s216, %s219
      %p225 = scmp.eq.s32.totalorder %s23, 0
      %p226 = por %p224, %p225
      %p227 = scmp.ne.s32.totalorder %s216, %s219
      %p228 = scmp.eq.s32.totalorder %s28, 1
      %p229 = por %p227, %p228
      %p230 = scmp.ne.s32.totalorder %s219, %s220
      %p231 = scmp.eq.s32.totalorder %s28, 0
      %p232 = por %p230, %p231
      %p233 = scmp.ne.s32.totalorder %s219, %s220
      %p234 = scmp.eq.s32.totalorder %s29, 1
      %p235 = por %p233, %p234
      %p237 = scmp.ne.s32.totalorder %s220, %s236
      %p238 = scmp.eq.s32.totalorder %s29, 0
      %p239 = por %p237, %p238
      %s240 = ssub.s32 %s23, %s30
      %p241 = scmp.eq.s32.totalorder %s240, 0
      %s243 = sadd.s32 %s242, 1
      %s244 = scalar_select %p241, %s242, %s243
      %p247 = pneg %p241
      %p248 = scmp.eq.s32.totalorder %s23, 1
      %p249 = por %p247, %p248
      %p250 = scmp.ne.s32.totalorder %s242, %s245
      %p251 = scmp.eq.s32.totalorder %s23, 0
      %p252 = por %p250, %p251
      %p253 = scmp.ne.s32.totalorder %s242, %s245
      %p254 = scmp.eq.s32.totalorder %s28, 1
      %p255 = por %p253, %p254
      %p256 = scmp.ne.s32.totalorder %s245, %s246
      %p257 = scmp.eq.s32.totalorder %s28, 0
      %p258 = por %p256, %p257
      %p259 = scmp.ne.s32.totalorder %s245, %s246
      %p260 = scmp.eq.s32.totalorder %s29, 1
      %p261 = por %p259, %p260
      %p263 = scmp.ne.s32.totalorder %s246, %s262
      %p264 = scmp.eq.s32.totalorder %s29, 0
      %p265 = por %p263, %p264
      %s266 = ssub.s32 %s23, %s30
      %p267 = scmp.eq.s32.totalorder %s266, 0
      %s269 = sadd.s32 %s268, 1
      %s270 = scalar_select %p267, %s268, %s269
      %p273 = pneg %p267
      %p274 = scmp.eq.s32.totalorder %s23, 1
      %p275 = por %p273, %p274
      %p276 = scmp.ne.s32.totalorder %s268, %s271
      %p277 = scmp.eq.s32.totalorder %s23, 0
      %p278 = por %p276, %p277
      %p279 = scmp.ne.s32.totalorder %s268, %s271
      %p280 = scmp.eq.s32.totalorder %s28, 1
      %p281 = por %p279, %p280
      %p282 = scmp.ne.s32.totalorder %s271, %s272
      %p283 = scmp.eq.s32.totalorder %s28, 0
      %p284 = por %p282, %p283
      %p285 = scmp.ne.s32.totalorder %s271, %s272
      %p286 = scmp.eq.s32.totalorder %s29, 1
      %p287 = por %p285, %p286
      %p289 = scmp.ne.s32.totalorder %s272, %s288
      %p290 = scmp.eq.s32.totalorder %s29, 0
      %p291 = por %p289, %p290
      %s292 = ssub.s32 %s23, %s30
      %p293 = scmp.eq.s32.totalorder %s292, 0
      %s295 = sadd.s32 %s294, 1
      %s296 = scalar_select %p293, %s294, %s295
      %p299 = pneg %p293
      %p300 = scmp.eq.s32.totalorder %s23, 1
      %p301 = por %p299, %p300
      %p302 = scmp.ne.s32.totalorder %s294, %s297
      %p303 = scmp.eq.s32.totalorder %s23, 0
      %p304 = por %p302, %p303
      %p305 = scmp.ne.s32.totalorder %s294, %s297
      %p306 = scmp.eq.s32.totalorder %s28, 1
      %p307 = por %p305, %p306
      %p308 = scmp.ne.s32.totalorder %s297, %s298
      %p309 = scmp.eq.s32.totalorder %s28, 0
      %p310 = por %p308, %p309
      %p311 = scmp.ne.s32.totalorder %s297, %s298
      %p312 = scmp.eq.s32.totalorder %s29, 1
      %p313 = por %p311, %p312
      %p315 = scmp.ne.s32.totalorder %s298, %s314
      %p316 = scmp.eq.s32.totalorder %s29, 0
      %p317 = por %p315, %p316
      %s318 = ssub.s32 %s23, %s30
      %p319 = scmp.eq.s32.totalorder %s318, 0
      %s321 = sadd.s32 %s320, 1
      %s322 = scalar_select %p319, %s320, %s321
      %p325 = pneg %p319
      %p326 = scmp.eq.s32.totalorder %s23, 1
      %p327 = por %p325, %p326
      %p328 = scmp.ne.s32.totalorder %s320, %s323
      %p329 = scmp.eq.s32.totalorder %s23, 0
      %p330 = por %p328, %p329
      %p331 = scmp.ne.s32.totalorder %s320, %s323
      %p332 = scmp.eq.s32.totalorder %s28, 1
      %p333 = por %p331, %p332
      %p334 = scmp.ne.s32.totalorder %s323, %s324
      %p335 = scmp.eq.s32.totalorder %s28, 0
      %p336 = por %p334, %p335
      %p337 = scmp.ne.s32.totalorder %s323, %s324
      %p338 = scmp.eq.s32.totalorder %s29, 1
      %p339 = por %p337, %p338
      %p341 = scmp.ne.s32.totalorder %s324, %s340
      %p342 = scmp.eq.s32.totalorder %s29, 0
      %p343 = por %p341, %p342
      %s345 = sadd.s32 %s344, 1
      %p348 = scmp.eq.s32.totalorder %s23, 1
      %p349 = scmp.ne.s32.totalorder %s344, %s346
      %p350 = scmp.eq.s32.totalorder %s23, 0
      %p351 = por %p349, %p350
      %p352 = scmp.ne.s32.totalorder %s344, %s346
      %p353 = scmp.eq.s32.totalorder %s28, 1
      %p354 = por %p352, %p353
      %p355 = scmp.ne.s32.totalorder %s346, %s347
      %p356 = scmp.eq.s32.totalorder %s28, 0
      %p357 = por %p355, %p356
      %p358 = scmp.ne.s32.totalorder %s346, %s347
      %p359 = scmp.eq.s32.totalorder %s29, 1
      %p360 = por %p358, %p359
      %p362 = scmp.ne.s32.totalorder %s347, %s361
      %p363 = scmp.eq.s32.totalorder %s29, 0
      %p364 = por %p362, %p363
      %p365 = scmp.le.s32.totalorder 1, %s23
      %p366 = scmp.lt.s32.totalorder %s23, 3
      %p367 = pnand %p365, %p366
      %p368 = pneg %p367
      // Predicated region
      $region9: #{model_forward.1} parent=5 // pred_check
        _
      $region10: #{model_forward.1} parent=5 // pred_check_branch
        %370 = sbr.rel (%p367) target = $region12
      $region11: #{model_forward.1} parent=5 // pred_region
        %s371 = ssub.s32 %s23, 1
        // Predicated region
        $region13: #{model_forward.1} parent=11 // pred_check
          %p372 = pneg %p44
        $region14: #{model_forward.1} parent=11 // pred_check_branch
          %374 = sbr.rel (%p372) target = $region16
        $region15: #{model_forward.1} parent=11 // pred_region
          _
        $region16: #{model_forward.1} parent=11 // pred_fallthru
          _
        // Predicated region
        $region17: #{model_forward.1} parent=11 // pred_check
          %p375 = pneg %p65
        $region18: #{model_forward.1} parent=11 // pred_check_branch
          %377 = sbr.rel (%p375) target = $region20
        $region19: #{model_forward.1} parent=11 // pred_region
          _
        $region20: #{model_forward.1} parent=11 // pred_fallthru
          _
        // Predicated region
        $region21: #{model_forward.1} parent=11 // pred_check
          %p378 = pneg %p86
        $region22: #{model_forward.1} parent=11 // pred_check_branch
          %380 = sbr.rel (%p378) target = $region24
        $region23: #{model_forward.1} parent=11 // pred_region
          _
        $region24: #{model_forward.1} parent=11 // pred_fallthru
          _
        // Predicated region
        $region25: #{model_forward.1} parent=11 // pred_check
          %p381 = pneg %p107
        $region26: #{model_forward.1} parent=11 // pred_check_branch
          %383 = sbr.rel (%p381) target = $region28
        $region27: #{model_forward.1} parent=11 // pred_region
          _
        $region28: #{model_forward.1} parent=11 // pred_fallthru
          _
        // Predicated region
        $region29: #{model_forward.1} parent=11 // pred_check
          %p384 = pneg %p128
        $region30: #{model_forward.1} parent=11 // pred_check_branch
          %386 = sbr.rel (%p384) target = $region32
        $region31: #{model_forward.1} parent=11 // pred_region
          _
        $region32: #{model_forward.1} parent=11 // pred_fallthru
          _
      $region12: #{model_forward.1} parent=5 // pred_fallthru
        _
      %p387 = scmp.lt.s32.totalorder %s23, 2
      // Predicated region
      $region33: #{model_forward.1} parent=5 // pred_check
        %p388 = pneg %p387
      $region34: #{model_forward.1} parent=5 // pred_check_branch
        %390 = sbr.rel (%p388) target = $region36
      $region35: #{model_forward.1} parent=5 // pred_region
        // Predicated region
        $region37: #{model_forward.1} parent=35 // pred_check
          %p391 = pneg %p148
        $region38: #{model_forward.1} parent=35 // pred_check_branch
          %393 = sbr.rel (%p391) target = $region40
        $region39: #{model_forward.1} parent=35 // pred_region
          %p394 = scmp.lt.s32.totalorder %s23, 1
          %s395 = scalar_select %p394, %s23, 1
          %s396 = scalar_lea.vmem %s5, %s395
        $region40: #{model_forward.1} parent=35 // pred_fallthru
          _
        // Predicated region
        $region41: #{model_forward.1} parent=35 // pred_check
          %p397 = pneg %p174
        $region42: #{model_forward.1} parent=35 // pred_check_branch
          %399 = sbr.rel (%p397) target = $region44
        $region43: #{model_forward.1} parent=35 // pred_region
          %p400 = scmp.lt.s32.totalorder %s23, 1
          %s401 = scalar_select %p400, %s23, 1
          %s402 = smul.addr %s401, 16
          %s403 = smul.addr %s402, 4
          %s404 = scalar_lea.vmem %s6, %s403
        $region44: #{model_forward.1} parent=35 // pred_fallthru
          _
        // Predicated region
        $region45: #{model_forward.1} parent=35 // pred_check
          %p405 = pneg %p200
        $region46: #{model_forward.1} parent=35 // pred_check_branch
          %407 = sbr.rel (%p405) target = $region48
        $region47: #{model_forward.1} parent=35 // pred_region
          %p408 = scmp.lt.s32.totalorder %s23, 1
          %s409 = scalar_select %p408, %s23, 1
          %s410 = scalar_lea.vmem %s7, %s409
        $region48: #{model_forward.1} parent=35 // pred_fallthru
          _
        // Predicated region
        $region49: #{model_forward.1} parent=35 // pred_check
          %p411 = pneg %p226
        $region50: #{model_forward.1} parent=35 // pred_check_branch
          %413 = sbr.rel (%p411) target = $region52
        $region51: #{model_forward.1} parent=35 // pred_region
          %p414 = scmp.lt.s32.totalorder %s23, 1
          %s415 = scalar_select %p414, %s23, 1
          %s416 = smul.addr %s415, 8
          %s417 = smul.addr %s416, 4
          %s418 = scalar_lea.vmem %s8, %s417
        $region52: #{model_forward.1} parent=35 // pred_fallthru
          _
        // Predicated region
        $region53: #{model_forward.1} parent=35 // pred_check
          %p419 = pneg %p252
        $region54: #{model_forward.1} parent=35 // pred_check_branch
          %421 = sbr.rel (%p419) target = $region56
        $region55: #{model_forward.1} parent=35 // pred_region
          %p422 = scmp.lt.s32.totalorder %s23, 1
          %s423 = scalar_select %p422, %s23, 1
          %s424 = scalar_lea.vmem %s9, %s423
        $region56: #{model_forward.1} parent=35 // pred_fallthru
          _
        // Predicated region
        $region57: #{model_forward.1} parent=35 // pred_check
          %p425 = pneg %p278
        $region58: #{model_forward.1} parent=35 // pred_check_branch
          %427 = sbr.rel (%p425) target = $region60
        $region59: #{model_forward.1} parent=35 // pred_region
          %p428 = scmp.lt.s32.totalorder %s23, 1
          %s429 = scalar_select %p428, %s23, 1
          %s430 = smul.addr %s429, 16
          %s431 = smul.addr %s430, 8
          %s432 = scalar_lea.vmem %s10, %s431
        $region60: #{model_forward.1} parent=35 // pred_fallthru
          _
        // Predicated region
        $region61: #{model_forward.1} parent=35 // pred_check
          %p433 = pneg %p304
        $region62: #{model_forward.1} parent=35 // pred_check_branch
          %435 = sbr.rel (%p433) target = $region64
        $region63: #{model_forward.1} parent=35 // pred_region
          %s436 = sand.u32 %s294, 1
          %s437 = scalar_lea.sflag [#allocation5], %s436
          %s438 = sand.u32 %s294, 1
          %s439 = smul.addr %s438, 320
          %s440 = scalar_lea.vmem [#allocation4], %s439
          %442 = vsyncadd %s437, 0
          %s443 = smul.addr %s23, 80
          %s444 = smul.addr %s443, 4
          %s445 = scalar_lea.hbm %s11, %s444
          %s446 = sshll.u32 %s445, 4
          %s447 = int_to_ptr.hbm [resolvable:$true] %s446
          %s448 = sshll.u32 %s440, 4
          %s449 = int_to_ptr.vmem [resolvable:$true] %s448
          %454 = dma.hbm_to_vmem [thread:$0]  %s447, 5120, %s449, %s437, 64, 64, 4
        $region64: #{model_forward.1} parent=35 // pred_fallthru
          _
        // Predicated region
        $region65: #{model_forward.1} parent=35 // pred_check
          %p455 = pneg %p330
        $region66: #{model_forward.1} parent=35 // pred_check_branch
          %457 = sbr.rel (%p455) target = $region68
        $region67: #{model_forward.1} parent=35 // pred_region
          %p458 = scmp.lt.s32.totalorder %s23, 1
          %s459 = scalar_select %p458, %s23, 1
          %s460 = smul.addr %s459, 40
          %s461 = smul.addr %s460, 4
          %s462 = scalar_lea.vmem %s12, %s461
        $region68: #{model_forward.1} parent=35 // pred_fallthru
          _
      $region36: #{model_forward.1} parent=5 // pred_fallthru
        _
      %p463 = scmp.le.s32.totalorder 1, %s23
      %p464 = scmp.lt.s32.totalorder %s23, 3
      %p465 = pnand %p463, %p464
      %p466 = pneg %p465
      // Predicated region
      $region69: #{model_forward.1} parent=5 // pred_check
        _
      $region70: #{model_forward.1} parent=5 // pred_check_branch
        %468 = sbr.rel (%p465) target = $region72
      $region71: #{model_forward.1} parent=5 // pred_region
        %s469 = ssub.s32 %s23, 1
        %s470 = sand.u32 %s297, 1
        %s471 = scalar_lea.sflag [#allocation5], %s470
        %s472 = sand.u32 %s297, 1
        %s473 = smul.addr %s472, 320
        %s474 = scalar_lea.vmem [#allocation4], %s473
        // Predicated region
        $region73: #{model_forward.1} parent=71 // pred_check
          %p475 = pneg %p310
        $region74: #{model_forward.1} parent=71 // pred_check_branch
          %477 = sbr.rel (%p475) target = $region76
        $region75: #{model_forward.1} parent=71 // pred_region
          %479 = dma.done %s471, 5120
        $region76: #{model_forward.1} parent=71 // pred_fallthru
          _
        %p480 = pneg %p44
        %p481 = pneg %p41
        %p482 = pneg %p65
        %p483 = pneg %p62
        %p484 = pneg %p86
        %p485 = pneg %p83
        %p486 = pneg %p107
        %p487 = pneg %p104
        %p488 = pneg %p128
        %p489 = pneg %p125
        %p490 = scmp.lt.s32.totalorder %s28, 1
        %s491 = scalar_select %p490, %s28, 1
        %s492 = scalar_lea.vmem %s5, %s491
        %p493 = pneg %p154
        %p494 = pneg %p151
        %p495 = scmp.lt.s32.totalorder %s28, 1
        %s496 = scalar_select %p495, %s28, 1
        %s497 = smul.addr %s496, 16
        %s498 = smul.addr %s497, 4
        %s499 = scalar_lea.vmem %s6, %s498
        %p500 = pneg %p180
        %p501 = pneg %p177
        %p502 = scmp.lt.s32.totalorder %s28, 1
        %s503 = scalar_select %p502, %s28, 1
        %s504 = scalar_lea.vmem %s7, %s503
        %p505 = pneg %p206
        %p506 = pneg %p203
        %p507 = scmp.lt.s32.totalorder %s28, 1
        %s508 = scalar_select %p507, %s28, 1
        %s509 = smul.addr %s508, 8
        %s510 = smul.addr %s509, 4
        %s511 = scalar_lea.vmem %s8, %s510
        %p512 = pneg %p232
        %p513 = pneg %p229
        %p514 = scmp.lt.s32.totalorder %s28, 1
        %s515 = scalar_select %p514, %s28, 1
        %s516 = scalar_lea.vmem %s9, %s515
        %p517 = pneg %p258
        %p518 = pneg %p255
        %p519 = scmp.lt.s32.totalorder %s28, 1
        %s520 = scalar_select %p519, %s28, 1
        %s521 = smul.addr %s520, 16
        %s522 = smul.addr %s521, 8
        %s523 = scalar_lea.vmem %s10, %s522
        %p524 = pneg %p284
        %p525 = pneg %p281
        %s526 = sand.u32 %s297, 1
        %s527 = scalar_lea.sflag [#allocation5], %s526
        %s528 = sand.u32 %s297, 1
        %s529 = smul.addr %s528, 320
        %s530 = scalar_lea.vmem [#allocation4], %s529
        %p531 = pneg %p310
        %p532 = pneg %p307
        %p533 = scmp.lt.s32.totalorder %s28, 1
        %s534 = scalar_select %p533, %s28, 1
        %s535 = smul.addr %s534, 40
        %s536 = smul.addr %s535, 4
        %s537 = scalar_lea.vmem %s12, %s536
        %p538 = pneg %p336
        %p539 = pneg %p333
        %p540 = pneg %p357
        %p541 = pneg %p354
        %p542 = scmp.lt.s32.totalorder %s28, 1
        %s543 = scalar_select %p542, %s28, 1
        %s544 = scalar_lea.vmem %s5, %s543
        %p545 = scmp.lt.s32.totalorder %s28, 1
        %s546 = scalar_select %p545, %s28, 1
        %s547 = smul.addr %s546, 16
        %s548 = smul.addr %s547, 4
        %s549 = scalar_lea.vmem %s6, %s548
        %p550 = scmp.lt.s32.totalorder %s28, 1
        %s551 = scalar_select %p550, %s28, 1
        %s552 = scalar_lea.vmem %s7, %s551
        %p553 = scmp.lt.s32.totalorder %s28, 1
        %s554 = scalar_select %p553, %s28, 1
        %s555 = smul.addr %s554, 8
        %s556 = smul.addr %s555, 4
        %s557 = scalar_lea.vmem %s8, %s556
        %p558 = scmp.lt.s32.totalorder %s28, 1
        %s559 = scalar_select %p558, %s28, 1
        %s560 = scalar_lea.vmem %s9, %s559
        %p561 = scmp.lt.s32.totalorder %s28, 1
        %s562 = scalar_select %p561, %s28, 1
        %s563 = smul.addr %s562, 16
        %s564 = smul.addr %s563, 8
        %s565 = scalar_lea.vmem %s10, %s564
        %p566 = scmp.lt.s32.totalorder %s28, 1
        %s567 = scalar_select %p566, %s28, 1
        %s568 = smul.addr %s567, 40
        %s569 = smul.addr %s568, 4
        %s570 = scalar_lea.vmem %s12, %s569
        %p572 = scmp.eq.s32.totalorder %s28, 0
        // Predicated region
        $region77: #{model_forward.1} parent=71 // pred_check
          %p573 = pneg %p572
        $region78: #{model_forward.1} parent=71 // pred_check_branch
          %575 = sbr.rel (%p573) target = $region80
        $region79: #{model_forward.1} parent=71 // pred_region
          %v576 = vld [vmem:[%s0] sm:$0xff]
          %577 = vst [vmem:[#allocation2] sm:$0xff] %v576
          %578 = vst [vmem:[#allocation3] sm:$0xff] 0.0
        $region80: #{model_forward.1} parent=71 // pred_fallthru
          _
        %v579 = vld [vmem:[#allocation2] sm:$0xff]
        %v580 = vld [vmem:[#allocation3] sm:$0xff]
        %v581 = vadd.f32 %v579, %v580
        %v582 = vmul.f32 %v581, %v581
        %583 = vadd.xlane.f32.xlu0 %v582
        %v584 = vpop.xlane.xlu0 %583
        %v585 = vmul.f32 %v584, 0.015625
        %v586 = vadd.f32 %v585, 1e-06
        %v587 = vrsqrt.pop %v586
        %v588 = vmul.f32 %v587, %v586
        %v589 = vmul.f32 %v588, %v587
        %v590 = vmul.f32 0.5, %v589
        %v591 = vsub.f32 1.5, %v590
        %v592 = vmul.f32 %v587, %v591
        %vm593 = vweird.f32 %v586
        %vm594 = vweird.f32 %v587
        %vm595 = vmor %vm593, %vm594
        %v596 = vsel %vm595, %v587, %v592
        %v597 = vmul.f32 %v581, %v596
        %v598 = vld [vmem:[%s544] sm:$0x1]
        %v600 = vperm.slane %v598, 0
        %v602 = vmul.f32 %v597, %v600
        %v603 = vpack.c.bf16 %v602, %v602
        %v604 = vld [vmem:[%s549] sm:$0xf]
        %v605 = vld [vmem:[%s549 + $0x4] sm:$0xf]
        %v606 = vld [vmem:[%s549 + $0x8] sm:$0xf]
        %v607 = vld [vmem:[%s549 + $0xc] sm:$0xf]
        %v608 = vld [vmem:[%s549 + $0x10] sm:$0xf]
        %v609 = vld [vmem:[%s549 + $0x14] sm:$0xf]
        %v610 = vld [vmem:[%s549 + $0x18] sm:$0xf]
        %v611 = vld [vmem:[%s549 + $0x1c] sm:$0xf]
        %v612 = vld [vmem:[%s549 + $0x20] sm:$0xf]
        %v613 = vld [vmem:[%s549 + $0x24] sm:$0xf]
        %v614 = vld [vmem:[%s549 + $0x28] sm:$0xf]
        %v615 = vld [vmem:[%s549 + $0x2c] sm:$0xf]
        %v616 = vld [vmem:[%s549 + $0x30] sm:$0xf]
        %v617 = vld [vmem:[%s549 + $0x34] sm:$0xf]
        %v618 = vld [vmem:[%s549 + $0x38] sm:$0xf]
        %v619 = vld [vmem:[%s549 + $0x3c] sm:$0xf]
        %v620 = vld [vmem:[%s552] sm:$0x1]
        %v622 = vperm.slane %v620, 0
        %v640 = vunpack.c.l.b16 %v604
        %v641 = vunpack.c.l.b16 %v605
        %v642 = vunpack.c.l.b16 %v606
        %v643 = vunpack.c.l.b16 %v607
        %v644 = vunpack.c.l.b16 %v608
        %v645 = vunpack.c.l.b16 %v609
        %v646 = vunpack.c.l.b16 %v610
        %v647 = vunpack.c.l.b16 %v611
        %v648 = vunpack.c.l.b16 %v612
        %v649 = vunpack.c.l.b16 %v613
        %v650 = vunpack.c.l.b16 %v614
        %v651 = vunpack.c.l.b16 %v615
        %v652 = vunpack.c.l.b16 %v616
        %v653 = vunpack.c.l.b16 %v617
        %v654 = vunpack.c.l.b16 %v618
        %v655 = vunpack.c.l.b16 %v619
        %v656 = vpack.c.b16 %v641, %v640
        %v657 = vpack.c.b16 %v643, %v642
        %v658 = vpack.c.b16 %v645, %v644
        %v659 = vpack.c.b16 %v647, %v646
        %v660 = vpack.c.b16 %v649, %v648
        %v661 = vpack.c.b16 %v651, %v650
        %v662 = vpack.c.b16 %v653, %v652
        %v663 = vpack.c.b16 %v655, %v654
        %672 = vmatpush.bf16.msra.mxu0 %v663
        %673 = vmatpush.bf16.msra.mxu0 %v662
        %674 = vmatpush.bf16.msra.mxu0 %v661
        %675 = vmatpush.bf16.msra.mxu0 %v660
        %676 = vmatpush.bf16.msra.mxu0 %v659
        %677 = vmatpush.bf16.msra.mxu0 %v658
        %678 = vmatpush.bf16.msra.mxu0 %v657
        %679 = vmatpush.bf16.msra.mxu0 %v656
        %680 = vmatmul.bf16.gmra.mxu0 %v603
        %v681 = vpop.f32.mrf.mxu0
        %v682 = vadd.f32 %v622, %v681
        %v683 = vpop.f32.mrf.mxu0
        %684 = vdwg.mxu0
        %v685 = vpack.c.bf16 %v682, %v682
        %v686 = vld [vmem:[%s3] sm:$0xf]
        %v687 = vld [vmem:[%s3 + $0x4] sm:$0xf]
        %v688 = vld [vmem:[%s3 + $0x8] sm:$0xf]
        %v689 = vld [vmem:[%s3 + $0xc] sm:$0xf]
        %v690 = vld [vmem:[%s3 + $0x10] sm:$0xf]
        %v691 = vld [vmem:[%s3 + $0x14] sm:$0xf]
        %v692 = vld [vmem:[%s3 + $0x18] sm:$0xf]
        %v693 = vld [vmem:[%s3 + $0x1c] sm:$0xf]
        %v694 = vld [vmem:[%s3 + $0x20] sm:$0xf]
        %v695 = vld [vmem:[%s3 + $0x24] sm:$0xf]
        %v696 = vld [vmem:[%s3 + $0x28] sm:$0xf]
        %v697 = vld [vmem:[%s3 + $0x2c] sm:$0xf]
        %v698 = vld [vmem:[%s3 + $0x30] sm:$0xf]
        %v699 = vld [vmem:[%s3 + $0x34] sm:$0xf]
        %v700 = vld [vmem:[%s3 + $0x38] sm:$0xf]
        %v701 = vld [vmem:[%s3 + $0x3c] sm:$0xf]
        %v718 = vunpack.c.l.b16 %v686
        %v719 = vunpack.c.l.b16 %v687
        %v720 = vunpack.c.l.b16 %v688
        %v721 = vunpack.c.l.b16 %v689
        %v722 = vunpack.c.l.b16 %v690
        %v723 = vunpack.c.l.b16 %v691
        %v724 = vunpack.c.l.b16 %v692
        %v725 = vunpack.c.l.b16 %v693
        %v726 = vunpack.c.l.b16 %v694
        %v727 = vunpack.c.l.b16 %v695
        %v728 = vunpack.c.l.b16 %v696
        %v729 = vunpack.c.l.b16 %v697
        %v730 = vunpack.c.l.b16 %v698
        %v731 = vunpack.c.l.b16 %v699
        %v732 = vunpack.c.l.b16 %v700
        %v733 = vunpack.c.l.b16 %v701
        %v734 = vpack.c.b16 %v719, %v718
        %v735 = vpack.c.b16 %v721, %v720
        %v736 = vpack.c.b16 %v723, %v722
        %v737 = vpack.c.b16 %v725, %v724
        %v738 = vpack.c.b16 %v727, %v726
        %v739 = vpack.c.b16 %v729, %v728
        %v740 = vpack.c.b16 %v731, %v730
        %v741 = vpack.c.b16 %v733, %v732
        %750 = vmatpush.bf16.msra.mxu0 %v741
        %751 = vmatpush.bf16.msra.mxu0 %v740
        %752 = vmatpush.bf16.msra.mxu0 %v739
        %753 = vmatpush.bf16.msra.mxu0 %v738
        %754 = vmatpush.bf16.msra.mxu0 %v737
        %755 = vmatpush.bf16.msra.mxu0 %v736
        %756 = vmatpush.bf16.msra.mxu0 %v735
        %757 = vmatpush.bf16.msra.mxu0 %v734
        %758 = vmatmul.bf16.gmra.mxu0 %v685
        %v759 = vpop.f32.mrf.mxu0
        %v760 = vadd.f32 0.0, %v759
        %v761 = vpop.f32.mrf.mxu0
        %762 = vdwg.mxu0
        %v763 = vld [vmem:[%s1] sm:$0xff]
        %v764 = vmul.f32 %v682, %v763
        %v765 = vld [vmem:[%s2] sm:$0xff]
        %v766 = vmul.f32 %v760, %v765
        %v767 = vadd.f32 %v764, %v766
        %v768 = vlaneseq
        %v769 = vshrl.u32 %v768, 7
        %v770 = vlaneseq
        %v771 = vand.u32 %v770, 127
        %vm772 = vcmp.le.s32.totalorder %v771, %v769
        %v773 = vpack.c.bf16 %v767, %v767
        %v774 = vld [vmem:[%s557] sm:$0xf]
        %v775 = vld [vmem:[%s557 + $0x4] sm:$0xf]
        %v776 = vld [vmem:[%s557 + $0x8] sm:$0xf]
        %v777 = vld [vmem:[%s557 + $0xc] sm:$0xf]
        %v778 = vld [vmem:[%s557 + $0x10] sm:$0xf]
        %v779 = vld [vmem:[%s557 + $0x14] sm:$0xf]
        %v780 = vld [vmem:[%s557 + $0x18] sm:$0xf]
        %v781 = vld [vmem:[%s557 + $0x1c] sm:$0xf]
        %v783 = vunpack.c.l.b16 %v773
        %v784 = vpack.c.b16 %v783, %v783
        %785 = vrot.lane.b32.xlu0 %v784, 64
        %v786 = vpop.permute.xlu0 %785
        %vm787 = vcmask 130048
        %v789 = vsel %vm787, %v773, 0
        %v792 = vsel %vm787, %v786, 0
        %794 = vmatpush.bf16.xpose.msra.mxu0 0
        %795 = vmatpush.bf16.xpose.msra.mxu0 0
        %796 = vmatpush.bf16.xpose.msra.mxu0 0
        %797 = vmatpush.bf16.xpose.msra.mxu0 0
        %798 = vmatpush.bf16.xpose.msra.mxu0 0
        %799 = vmatpush.bf16.xpose.msra.mxu0 0
        %800 = vmatpush.bf16.xpose.msra.mxu0 0
        %801 = vmatpush.bf16.xpose.msra.mxu0 %v792
        %802 = vmatmul.bf16.gmra.mxu0 %v789
        %v803 = vpop.f32.mrf.mxu0
        %v804 = vadd.f32 0.0, %v803
        %v805 = vpop.f32.mrf.mxu0
        %806 = vdwg.mxu0
        %v807 = vmul.f32 %v804, 0.25
        %v808 = vsel %vm772, %v807, -1e+30
        %vm809 = vcmask 64512
        %v810 = vsel %vm809, %v808, -inf
        %811 = vmax.xlane.f32.xlu0 %v810
        %v812 = vpop.xlane.xlu0 %811
        %v813 = vsub.f32 %v808, %v812
        %v814 = vmul.f32 %v813, 1.442695
        %v815 = vpow.pop %v814
        %v816 = vsel %vm809, %v815, 0.0
        %817 = vadd.xlane.f32.xlu0 %v816
        %v818 = vpop.xlane.xlu0 %817
        %v819 = vrcp.pop %v818
        %v820 = vmul.f32 %v815, %v819
        %v821 = vpack.c.bf16 %v820, %v820
        %822 = vrot.lane.b32.xlu0 %v784, 32
        %v823 = vpop.permute.xlu0 %822
        %v825 = vsel %vm809, %v821, 0
        %vm827 = vcmask 1043456
        %v829 = vsel %vm827, %v823, 0
        %831 = vmatpush.bf16.msra.mxu0 0
        %832 = vmatpush.bf16.msra.mxu0 0
        %833 = vmatpush.bf16.msra.mxu0 0
        %834 = vmatpush.bf16.msra.mxu0 0
        %835 = vmatpush.bf16.msra.mxu0 0
        %836 = vmatpush.bf16.msra.mxu0 0
        %837 = vmatpush.bf16.msra.mxu0 0
        %838 = vmatpush.bf16.msra.mxu0 %v829
        %839 = vmatmul.bf16.gmra.mxu0 %v825
        %v840 = vpop.f32.mrf.mxu0
        %v841 = vadd.f32 0.0, %v840
        %v842 = vpop.f32.mrf.mxu0
        %843 = vdwg.mxu0
        %v844 = vpack.c.bf16 %v841, %v841
        %845 = vrot.lane.b32.xlu0 %v784, 112
        %v846 = vpop.permute.xlu0 %845
        %v848 = vsel %vm787, %v846, 0
        %850 = vmatpush.bf16.xpose.msra.mxu0 0
        %851 = vmatpush.bf16.xpose.msra.mxu0 0
        %852 = vmatpush.bf16.xpose.msra.mxu0 0
        %853 = vmatpush.bf16.xpose.msra.mxu0 0
        %854 = vmatpush.bf16.xpose.msra.mxu0 0
        %855 = vmatpush.bf16.xpose.msra.mxu0 0
        %856 = vmatpush.bf16.xpose.msra.mxu0 0
        %857 = vmatpush.bf16.xpose.msra.mxu0 %v792
        %858 = vmatmul.bf16.gmra.mxu0 %v848
        %v859 = vpop.f32.mrf.mxu0
        %v860 = vadd.f32 0.0, %v859
        %v861 = vpop.f32.mrf.mxu0
        %862 = vdwg.mxu0
        %v863 = vmul.f32 %v860, 0.25
        %v864 = vsel %vm772, %v863, -1e+30
        %v865 = vsel %vm809, %v864, -inf
        %866 = vmax.xlane.f32.xlu0 %v865
        %v867 = vpop.xlane.xlu0 %866
        %v868 = vsub.f32 %v864, %v867
        %v869 = vmul.f32 %v868, 1.442695
        %v870 = vpow.pop %v869
        %v871 = vsel %vm809, %v870, 0.0
        %872 = vadd.xlane.f32.xlu0 %v871
        %v873 = vpop.xlane.xlu0 %872
        %v874 = vrcp.pop %v873
        %v875 = vmul.f32 %v870, %v874
        %v876 = vpack.c.bf16 %v875, %v875
        %v878 = vsel %vm809, %v876, 0
        %880 = vmatpush.bf16.msra.mxu0 0
        %881 = vmatpush.bf16.msra.mxu0 0
        %882 = vmatpush.bf16.msra.mxu0 0
        %883 = vmatpush.bf16.msra.mxu0 0
        %884 = vmatpush.bf16.msra.mxu0 0
        %885 = vmatpush.bf16.msra.mxu0 0
        %886 = vmatpush.bf16.msra.mxu0 0
        %887 = vmatpush.bf16.msra.mxu0 %v829
        %888 = vmatmul.bf16.gmra.mxu0 %v878
        %v889 = vpop.f32.mrf.mxu0
        %v890 = vadd.f32 0.0, %v889
        %v891 = vpop.f32.mrf.mxu0
        %892 = vdwg.mxu0
        %v893 = vpack.c.bf16 %v890, %v890
        %v896 = vunpack.c.l.b16 %v776
        %v897 = vunpack.c.l.b16 %v777
        %v898 = vpack.c.b16 %v897, %v896
        %v901 = vsel %vm787, %v893, 0
        %903 = vmatpush.bf16.msra.mxu0 0
        %904 = vmatpush.bf16.msra.mxu0 0
        %905 = vmatpush.bf16.msra.mxu0 0
        %906 = vmatpush.bf16.msra.mxu0 0
        %907 = vmatpush.bf16.msra.mxu0 0
        %908 = vmatpush.bf16.msra.mxu0 0
        %909 = vmatpush.bf16.msra.mxu0 0
        %910 = vmatpush.bf16.msra.mxu0 %v898
        %911 = vmatmul.bf16.gmra.mxu0 %v901
        %v912 = vpop.f32.mrf.mxu0
        %v913 = vadd.f32 0.0, %v912
        %v914 = vpop.f32.mrf.mxu0
        %915 = vdwg.mxu0
        %v918 = vunpack.c.l.b16 %v774
        %v919 = vunpack.c.l.b16 %v775
        %v920 = vpack.c.b16 %v919, %v918
        %v923 = vsel %vm787, %v844, 0
        %925 = vmatpush.bf16.msra.mxu0 0
        %926 = vmatpush.bf16.msra.mxu0 0
        %927 = vmatpush.bf16.msra.mxu0 0
        %928 = vmatpush.bf16.msra.mxu0 0
        %929 = vmatpush.bf16.msra.mxu0 0
        %930 = vmatpush.bf16.msra.mxu0 0
        %931 = vmatpush.bf16.msra.mxu0 0
        %932 = vmatpush.bf16.msra.mxu0 %v920
        %933 = vmatmul.bf16.gmra.mxu0 %v923
        %v934 = vpop.f32.mrf.mxu0
        %v935 = vadd.f32 %v913, %v934
        %v936 = vpop.f32.mrf.mxu0
        %937 = vdwg.mxu0
        %938 = vrot.lane.b32.xlu0 %v784, 96
        %v939 = vpop.permute.xlu0 %938
        %940 = vrot.lane.b32.xlu0 %v784, 48
        %v941 = vpop.permute.xlu0 %940
        %v943 = vsel %vm787, %v939, 0
        %v946 = vsel %vm787, %v941, 0
        %948 = vmatpush.bf16.xpose.msra.mxu0 0
        %949 = vmatpush.bf16.xpose.msra.mxu0 0
        %950 = vmatpush.bf16.xpose.msra.mxu0 0
        %951 = vmatpush.bf16.xpose.msra.mxu0 0
        %952 = vmatpush.bf16.xpose.msra.mxu0 0
        %953 = vmatpush.bf16.xpose.msra.mxu0 0
        %954 = vmatpush.bf16.xpose.msra.mxu0 0
        %955 = vmatpush.bf16.xpose.msra.mxu0 %v946
        %956 = vmatmul.bf16.gmra.mxu0 %v943
        %v957 = vpop.f32.mrf.mxu0
        %v958 = vadd.f32 0.0, %v957
        %v959 = vpop.f32.mrf.mxu0
        %960 = vdwg.mxu0
        %v961 = vmul.f32 %v958, 0.25
        %v962 = vsel %vm772, %v961, -1e+30
        %v963 = vsel %vm809, %v962, -inf
        %964 = vmax.xlane.f32.xlu0 %v963
        %v965 = vpop.xlane.xlu0 %964
        %v966 = vsub.f32 %v962, %v965
        %v967 = vmul.f32 %v966, 1.442695
        %v968 = vpow.pop %v967
        %v969 = vsel %vm809, %v968, 0.0
        %970 = vadd.xlane.f32.xlu0 %v969
        %v971 = vpop.xlane.xlu0 %970
        %v972 = vrcp.pop %v971
        %v973 = vmul.f32 %v968, %v972
        %v974 = vpack.c.bf16 %v973, %v973
        %975 = vrot.lane.b32.xlu0 %v784, 16
        %v976 = vpop.permute.xlu0 %975
        %v978 = vsel %vm809, %v974, 0
        %v981 = vsel %vm827, %v976, 0
        %983 = vmatpush.bf16.msra.mxu0 0
        %984 = vmatpush.bf16.msra.mxu0 0
        %985 = vmatpush.bf16.msra.mxu0 0
        %986 = vmatpush.bf16.msra.mxu0 0
        %987 = vmatpush.bf16.msra.mxu0 0
        %988 = vmatpush.bf16.msra.mxu0 0
        %989 = vmatpush.bf16.msra.mxu0 0
        %990 = vmatpush.bf16.msra.mxu0 %v981
        %991 = vmatmul.bf16.gmra.mxu0 %v978
        %v992 = vpop.f32.mrf.mxu0
        %v993 = vadd.f32 0.0, %v992
        %v994 = vpop.f32.mrf.mxu0
        %995 = vdwg.mxu0
        %v996 = vpack.c.bf16 %v993, %v993
        %v999 = vunpack.c.l.b16 %v778
        %v1000 = vunpack.c.l.b16 %v779
        %v1001 = vpack.c.b16 %v1000, %v999
        %v1004 = vsel %vm787, %v996, 0
        %1006 = vmatpush.bf16.msra.mxu0 0
        %1007 = vmatpush.bf16.msra.mxu0 0
        %1008 = vmatpush.bf16.msra.mxu0 0
        %1009 = vmatpush.bf16.msra.mxu0 0
        %1010 = vmatpush.bf16.msra.mxu0 0
        %1011 = vmatpush.bf16.msra.mxu0 0
        %1012 = vmatpush.bf16.msra.mxu0 0
        %1013 = vmatpush.bf16.msra.mxu0 %v1001
        %1014 = vmatmul.bf16.gmra.mxu0 %v1004
        %v1015 = vpop.f32.mrf.mxu0
        %v1016 = vadd.f32 0.0, %v1015
        %v1017 = vpop.f32.mrf.mxu0
        %1018 = vdwg.mxu0
        %v1019 = vadd.f32 %v935, %v1016
        %1020 = vrot.lane.b32.xlu0 %v784, 80
        %v1021 = vpop.permute.xlu0 %1020
        %v1023 = vsel %vm787, %v1021, 0
        %1025 = vmatpush.bf16.xpose.msra.mxu0 0
        %1026 = vmatpush.bf16.xpose.msra.mxu0 0
        %1027 = vmatpush.bf16.xpose.msra.mxu0 0
        %1028 = vmatpush.bf16.xpose.msra.mxu0 0
        %1029 = vmatpush.bf16.xpose.msra.mxu0 0
        %1030 = vmatpush.bf16.xpose.msra.mxu0 0
        %1031 = vmatpush.bf16.xpose.msra.mxu0 0
        %1032 = vmatpush.bf16.xpose.msra.mxu0 %v946
        %1033 = vmatmul.bf16.gmra.mxu0 %v1023
        %v1034 = vpop.f32.mrf.mxu0
        %v1035 = vadd.f32 0.0, %v1034
        %v1036 = vpop.f32.mrf.mxu0
        %1037 = vdwg.mxu0
        %v1038 = vmul.f32 %v1035, 0.25
        %v1039 = vsel %vm772, %v1038, -1e+30
        %v1040 = vsel %vm809, %v1039, -inf
        %1041 = vmax.xlane.f32.xlu0 %v1040
        %v1042 = vpop.xlane.xlu0 %1041
        %v1043 = vsub.f32 %v1039, %v1042
        %v1044 = vmul.f32 %v1043, 1.442695
        %v1045 = vpow.pop %v1044
        %v1046 = vsel %vm809, %v1045, 0.0
        %1047 = vadd.xlane.f32.xlu0 %v1046
        %v1048 = vpop.xlane.xlu0 %1047
        %v1049 = vrcp.pop %v1048
        %v1050 = vmul.f32 %v1045, %v1049
        %v1051 = vpack.c.bf16 %v1050, %v1050
        %v1053 = vsel %vm809, %v1051, 0
        %1055 = vmatpush.bf16.msra.mxu0 0
        %1056 = vmatpush.bf16.msra.mxu0 0
        %1057 = vmatpush.bf16.msra.mxu0 0
        %1058 = vmatpush.bf16.msra.mxu0 0
        %1059 = vmatpush.bf16.msra.mxu0 0
        %1060 = vmatpush.bf16.msra.mxu0 0
        %1061 = vmatpush.bf16.msra.mxu0 0
        %1062 = vmatpush.bf16.msra.mxu0 %v981
        %1063 = vmatmul.bf16.gmra.mxu0 %v1053
        %v1064 = vpop.f32.mrf.mxu0
        %v1065 = vadd.f32 0.0, %v1064
        %v1066 = vpop.f32.mrf.mxu0
        %1067 = vdwg.mxu0
        %v1068 = vpack.c.bf16 %v1065, %v1065
        %v1071 = vunpack.c.l.b16 %v780
        %v1072 = vunpack.c.l.b16 %v781
        %v1073 = vpack.c.b16 %v1072, %v1071
        %v1076 = vsel %vm787, %v1068, 0
        %1078 = vmatpush.bf16.msra.mxu0 0
        %1079 = vmatpush.bf16.msra.mxu0 0
        %1080 = vmatpush.bf16.msra.mxu0 0
        %1081 = vmatpush.bf16.msra.mxu0 0
        %1082 = vmatpush.bf16.msra.mxu0 0
        %1083 = vmatpush.bf16.msra.mxu0 0
        %1084 = vmatpush.bf16.msra.mxu0 0
        %1085 = vmatpush.bf16.msra.mxu0 %v1073
        %1086 = vmatmul.bf16.gmra.mxu0 %v1076
        %v1087 = vpop.f32.mrf.mxu0
        %v1088 = vadd.f32 0.0, %v1087
        %v1089 = vpop.f32.mrf.mxu0
        %1090 = vdwg.mxu0
        %v1091 = vadd.f32 %v1019, %v1088
        %v1092 = vadd.f32 %v1091, %v581
        %v1093 = vmul.f32 %v1092, %v1092
        %1094 = vadd.xlane.f32.xlu0 %v1093
        %v1095 = vpop.xlane.xlu0 %1094
        %v1096 = vmul.f32 %v1095, 0.015625
        %v1097 = vadd.f32 %v1096, 1e-06
        %v1098 = vrsqrt.pop %v1097
        %v1099 = vmul.f32 %v1098, %v1097
        %v1100 = vmul.f32 %v1099, %v1098
        %v1101 = vmul.f32 0.5, %v1100
        %v1102 = vsub.f32 1.5, %v1101
        %v1103 = vmul.f32 %v1098, %v1102
        %vm1104 = vweird.f32 %v1097
        %vm1105 = vweird.f32 %v1098
        %vm1106 = vmor %vm1104, %vm1105
        %v1107 = vsel %vm1106, %v1098, %v1103
        %v1108 = vmul.f32 %v1092, %v1107
        %v1109 = vld [vmem:[%s560] sm:$0x1]
        %v1111 = vperm.slane %v1109, 0
        %v1113 = vmul.f32 %v1108, %v1111
        %v1114 = vcvt.s32.f32 %v771
        %v1115 = vld [vmem:[%s565] sm:$0xff]
        %v1116 = vld [vmem:[%s565 + $0x8] sm:$0xff]
        %v1117 = vld [vmem:[%s565 + $0x10] sm:$0xff]
        %v1118 = vld [vmem:[%s565 + $0x18] sm:$0xff]
        %v1119 = vld [vmem:[%s565 + $0x20] sm:$0xff]
        %v1120 = vld [vmem:[%s565 + $0x28] sm:$0xff]
        %v1121 = vld [vmem:[%s565 + $0x30] sm:$0xff]
        %v1122 = vld [vmem:[%s565 + $0x38] sm:$0xff]
        %v1123 = vld [vmem:[%s565 + $0x40] sm:$0xff]
        %v1124 = vld [vmem:[%s565 + $0x48] sm:$0xff]
        %v1125 = vld [vmem:[%s565 + $0x50] sm:$0xff]
        %v1126 = vld [vmem:[%s565 + $0x58] sm:$0xff]
        %v1127 = vld [vmem:[%s565 + $0x60] sm:$0xff]
        %v1128 = vld [vmem:[%s565 + $0x68] sm:$0xff]
        %v1129 = vld [vmem:[%s565 + $0x70] sm:$0xff]
        %v1130 = vld [vmem:[%s565 + $0x78] sm:$0xff]
        %1131 = vmatpush.msra.mxu0 %v1130
        %1132 = vmatpush.msra.mxu0 %v1129
        %1133 = vmatpush.msra.mxu0 %v1128
        %1134 = vmatpush.msra.mxu0 %v1127
        %1135 = vmatpush.msra.mxu0 %v1126
        %1136 = vmatpush.msra.mxu0 %v1125
        %1137 = vmatpush.msra.mxu0 %v1124
        %1138 = vmatpush.msra.mxu0 %v1123
        %1139 = vmatpush.msra.mxu0 %v1122
        %1140 = vmatpush.msra.mxu0 %v1121
        %1141 = vmatpush.msra.mxu0 %v1120
        %1142 = vmatpush.msra.mxu0 %v1119
        %1143 = vmatpush.msra.mxu0 %v1118
        %1144 = vmatpush.msra.mxu0 %v1117
        %1145 = vmatpush.msra.mxu0 %v1116
        %1146 = vmatpush.msra.mxu0 %v1115
        %1147 = vmatmul.f32.gmra.mxu0 %v1113
        %v1148 = vpop.f32.mrf.mxu0
        %v1149 = vadd.f32 0.0, %v1148
        %1150 = vdwg.mxu0
        %vm1151 = vcmp.lt.f32.partialorder %v1114, 4.0
        %v1152 = vsel %vm1151, %v1149, -1e+30
        %v1153 = vsel %vm809, %v1152, -inf
        %1154 = vmax.xlane.f32.xlu0 %v1153
        %v1155 = vpop.xlane.xlu0 %1154
        %v1156 = vsub.f32 %v1152, %v1155
        %v1157 = vmul.f32 %v1156, 1.442695
        %v1158 = vpow.pop %v1157
        %v1159 = vsel %vm809, %v1158, 0.0
        %1160 = vadd.xlane.f32.xlu0 %v1159
        %v1161 = vpop.xlane.xlu0 %1160
        %v1162 = vrcp.pop %v1161
        %v1163 = vmul.f32 %v1161, %v1162
        %v1164 = vsub.f32 1.0, %v1163
        %v1165 = vmul.f32 %v1162, %v1164
        %v1166 = vadd.f32 %v1162, %v1165
        %vm1167 = vweird.f32 %v1161
        %vm1168 = vweird.f32 %v1162
        %vm1169 = vmor %vm1167, %vm1168
        %v1170 = vsel %vm1169, %v1162, %v1166
        %v1171 = vand.u32 2147483647, %v1161
        %vm1172 = vcmp.eq.f32.partialorder %v1171, 8.507059e+37
        %v1173 = vand.u32 %v1161, 2147483648
        %v1174 = vor.u32 1.1754944e-38, %v1173
        %v1175 = vsel %vm1172, %v1174, %v1170
        %v1176 = vmul.f32 %v1158, %v1175
        %v1177 = vsel %vm809, %v1176, -inf
        %1178 = vmax.xlane.f32.xlu0 %v1177
        %v1179 = vpop.xlane.xlu0 %1178
        %vm1180 = vcmp.eq.f32.partialorder %v1176, %v1179
        %vm1181 = vmand %vm1180, %vm1151
        %v1182 = vsel %vm1181, %v1114, 8.0
        %v1183 = vsel %vm809, %v1182, inf
        %1184 = vmin.xlane.f32.xlu0 %v1183
        %v1185 = vpop.xlane.xlu0 %1184
        %vm1186 = vcmp.eq.f32.partialorder %v1114, %v1185
        %v1187 = vsel %vm1186, 1, 0
        %v1188 = vcvt.s32.f32 %v1187
        %v1189 = vsel %vm1186, -1.0, %v1176
        %v1190 = vsel %vm809, %v1189, -inf
        %1191 = vmax.xlane.f32.xlu0 %v1190
        %v1192 = vpop.xlane.xlu0 %1191
        %vm1193 = vcmp.eq.f32.partialorder %v1189, %v1192
        %vm1194 = vmand %vm1193, %vm1151
        %v1195 = vsel %vm1194, %v1114, 8.0
        %v1196 = vsel %vm809, %v1195, inf
        %1197 = vmin.xlane.f32.xlu0 %v1196
        %v1198 = vpop.xlane.xlu0 %1197
        %vm1199 = vcmp.eq.f32.partialorder %v1114, %v1198
        %v1200 = vsel %vm1199, 1, 0
        %v1201 = vcvt.s32.f32 %v1200
        %v1202 = vmul.f32 %v1179, %v1188
        %v1203 = vmul.f32 %v1192, %v1201
        %v1204 = vadd.f32 %v1202, %v1203
        %vm1205 = vcmp.eq.f32.partialorder %v1114, 4.0
        %v1206 = vsel %vm1205, %v1149, 0.0
        %v1207 = vsel %vm809, %v1206, 0.0
        %1208 = vadd.xlane.f32.xlu0 %v1207
        %v1209 = vpop.xlane.xlu0 %1208
        %v1210 = vxor.u32 %v1209, 2147483648
        %v1211 = vmul.f32 %v1210, 1.442695
        %v1212 = vpow.pop %v1211
        %v1213 = vadd.f32 %v1212, 1.0
        %v1214 = vrcp.pop %v1213
        %v1215 = vmul.f32 %v1213, %v1214
        %v1216 = vsub.f32 1.0, %v1215
        %v1217 = vmul.f32 %v1214, %v1216
        %v1218 = vadd.f32 %v1214, %v1217
        %vm1219 = vweird.f32 %v1213
        %vm1220 = vweird.f32 %v1214
        %vm1221 = vmor %vm1219, %vm1220
        %v1222 = vsel %vm1221, %v1214, %v1218
        %v1223 = vand.u32 2147483647, %v1213
        %vm1224 = vcmp.eq.f32.partialorder %v1223, 8.507059e+37
        %v1225 = vand.u32 %v1213, 2147483648
        %v1226 = vor.u32 1.1754944e-38, %v1225
        %v1227 = vsel %vm1224, %v1226, %v1222
        %v1228 = vmul.f32 1.0, %v1227
        %v1229 = vpack.c.bf16 %v1113, %v1113
        %v1230 = vld [vmem:[%s474] sm:$0xf]
        %v1231 = vld [vmem:[%s474 + $0x4] sm:$0xf]
        %v1232 = vld [vmem:[%s474 + $0x8] sm:$0xf]
        %v1233 = vld [vmem:[%s474 + $0xc] sm:$0xf]
        %v1234 = vld [vmem:[%s474 + $0x10] sm:$0xf]
        %v1235 = vld [vmem:[%s474 + $0x14] sm:$0xf]
        %v1236 = vld [vmem:[%s474 + $0x18] sm:$0xf]
        %v1237 = vld [vmem:[%s474 + $0x1c] sm:$0xf]
        %v1238 = vld [vmem:[%s474 + $0x20] sm:$0xf]
        %v1239 = vld [vmem:[%s474 + $0x24] sm:$0xf]
        %v1240 = vld [vmem:[%s474 + $0x28] sm:$0xf]
        %v1241 = vld [vmem:[%s474 + $0x2c] sm:$0xf]
        %v1242 = vld [vmem:[%s474 + $0x30] sm:$0xf]
        %v1243 = vld [vmem:[%s474 + $0x34] sm:$0xf]
        %v1244 = vld [vmem:[%s474 + $0x38] sm:$0xf]
        %v1245 = vld [vmem:[%s474 + $0x3c] sm:$0xf]
        %v1262 = vunpack.c.l.b16 %v1230
        %v1263 = vunpack.c.l.b16 %v1231
        %v1264 = vunpack.c.l.b16 %v1232
        %v1265 = vunpack.c.l.b16 %v1233
        %v1266 = vunpack.c.l.b16 %v1234
        %v1267 = vunpack.c.l.b16 %v1235
        %v1268 = vunpack.c.l.b16 %v1236
        %v1269 = vunpack.c.l.b16 %v1237
        %v1270 = vunpack.c.l.b16 %v1238
        %v1271 = vunpack.c.l.b16 %v1239
        %v1272 = vunpack.c.l.b16 %v1240
        %v1273 = vunpack.c.l.b16 %v1241
        %v1274 = vunpack.c.l.b16 %v1242
        %v1275 = vunpack.c.l.b16 %v1243
        %v1276 = vunpack.c.l.b16 %v1244
        %v1277 = vunpack.c.l.b16 %v1245
        %v1278 = vpack.c.b16 %v1263, %v1262
        %v1279 = vpack.c.b16 %v1265, %v1264
        %v1280 = vpack.c.b16 %v1267, %v1266
        %v1281 = vpack.c.b16 %v1269, %v1268
        %v1282 = vpack.c.b16 %v1271, %v1270
        %v1283 = vpack.c.b16 %v1273, %v1272
        %v1284 = vpack.c.b16 %v1275, %v1274
        %v1285 = vpack.c.b16 %v1277, %v1276
        %1294 = vmatpush.bf16.msra.mxu0 %v1285
        %1295 = vmatpush.bf16.msra.mxu0 %v1284
        %1296 = vmatpush.bf16.msra.mxu0 %v1283
        %1297 = vmatpush.bf16.msra.mxu0 %v1282
        %1298 = vmatpush.bf16.msra.mxu0 %v1281
        %1299 = vmatpush.bf16.msra.mxu0 %v1280
        %1300 = vmatpush.bf16.msra.mxu0 %v1279
        %1301 = vmatpush.bf16.msra.mxu0 %v1278
        %1302 = vmatmul.bf16.gmra.mxu0 %v1229
        %v1303 = vpop.f32.mrf.mxu0
        %v1304 = vadd.f32 0.0, %v1303
        %v1305 = vpop.f32.mrf.mxu0
        %1306 = vdwg.mxu0
        %v1307 = vxor.u32 %v1304, 2147483648
        %v1308 = vmul.f32 %v1307, 1.442695
        %v1309 = vpow.pop %v1308
        %v1310 = vadd.f32 %v1309, 1.0
        %v1311 = vrcp.pop %v1310
        %v1312 = vmul.f32 %v1310, %v1311
        %v1313 = vsub.f32 1.0, %v1312
        %v1314 = vmul.f32 %v1311, %v1313
        %v1315 = vadd.f32 %v1311, %v1314
        %vm1316 = vweird.f32 %v1310
        %vm1317 = vweird.f32 %v1311
        %vm1318 = vmor %vm1316, %vm1317
        %v1319 = vsel %vm1318, %v1311, %v1315
        %v1320 = vand.u32 2147483647, %v1310
        %vm1321 = vcmp.eq.f32.partialorder %v1320, 8.507059e+37
        %v1322 = vand.u32 %v1310, 2147483648
        %v1323 = vor.u32 1.1754944e-38, %v1322
        %v1324 = vsel %vm1321, %v1323, %v1319
        %v1325 = vmul.f32 1.0, %v1324
        %v1326 = vmul.f32 %v1304, %v1325
        %1328 = vrot.lane.b32.xlu0 %v1304, 64
        %v1329 = vpop.permute.xlu0 %1328
        %v1331 = vmul.f32 %v1326, %v1329
        %v1332 = vpack.c.bf16 %v1331, %v1331
        %v1333 = vld [vmem:[%s570] sm:$0xf]
        %v1334 = vld [vmem:[%s570 + $0x4] sm:$0xf]
        %v1335 = vld [vmem:[%s570 + $0x8] sm:$0xf]
        %v1336 = vld [vmem:[%s570 + $0xc] sm:$0xf]
        %v1337 = vld [vmem:[%s570 + $0x10] sm:$0xf]
        %v1338 = vld [vmem:[%s570 + $0x14] sm:$0xf]
        %v1339 = vld [vmem:[%s570 + $0x18] sm:$0xf]
        %v1340 = vld [vmem:[%s570 + $0x1c] sm:$0xf]
        %v1349 = vunpack.c.l.b16 %v1333
        %v1350 = vunpack.c.l.b16 %v1334
        %v1351 = vunpack.c.l.b16 %v1335
        %v1352 = vunpack.c.l.b16 %v1336
        %v1353 = vunpack.c.l.b16 %v1337
        %v1354 = vunpack.c.l.b16 %v1338
        %v1355 = vunpack.c.l.b16 %v1339
        %v1356 = vunpack.c.l.b16 %v1340
        %v1357 = vpack.c.b16 %v1350, %v1349
        %v1358 = vpack.c.b16 %v1352, %v1351
        %v1359 = vpack.c.b16 %v1354, %v1353
        %v1360 = vpack.c.b16 %v1356, %v1355
        %vm1365 = vcmask 523264
        %v1367 = vsel %vm1365, %v1332, 0
        %1369 = vmatpush.bf16.msra.mxu0 0
        %1370 = vmatpush.bf16.msra.mxu0 0
        %1371 = vmatpush.bf16.msra.mxu0 0
        %1372 = vmatpush.bf16.msra.mxu0 0
        %1373 = vmatpush.bf16.msra.mxu0 %v1360
        %1374 = vmatpush.bf16.msra.mxu0 %v1359
        %1375 = vmatpush.bf16.msra.mxu0 %v1358
        %1376 = vmatpush.bf16.msra.mxu0 %v1357
        %1377 = vmatmul.bf16.gmra.mxu0 %v1367
        %v1378 = vpop.f32.mrf.mxu0
        %v1379 = vadd.f32 0.0, %v1378
        %v1380 = vpop.f32.mrf.mxu0
        %1381 = vdwg.mxu0
        %vm1382 = vcmp.eq.f32.partialorder %v1114, 0.0
        %v1383 = vsel %vm1382, %v1204, 0.0
        %v1384 = vsel %vm809, %v1383, 0.0
        %1385 = vadd.xlane.f32.xlu0 %v1384
        %v1386 = vpop.xlane.xlu0 %1385
        %v1387 = vmul.f32 %v1386, %v1379
        %v1388 = vadd.f32 %v1387, 0.0
        %s1389 = scalar_lea.vmem %s474, 64 [#allocation4]
        %v1390 = vld [vmem:[%s1389] sm:$0xf]
        %v1391 = vld [vmem:[%s1389 + $0x4] sm:$0xf]
        %v1392 = vld [vmem:[%s1389 + $0x8] sm:$0xf]
        %v1393 = vld [vmem:[%s1389 + $0xc] sm:$0xf]
        %v1394 = vld [vmem:[%s1389 + $0x10] sm:$0xf]
        %v1395 = vld [vmem:[%s1389 + $0x14] sm:$0xf]
        %v1396 = vld [vmem:[%s1389 + $0x18] sm:$0xf]
        %v1397 = vld [vmem:[%s1389 + $0x1c] sm:$0xf]
        %v1398 = vld [vmem:[%s1389 + $0x20] sm:$0xf]
        %v1399 = vld [vmem:[%s1389 + $0x24] sm:$0xf]
        %v1400 = vld [vmem:[%s1389 + $0x28] sm:$0xf]
        %v1401 = vld [vmem:[%s1389 + $0x2c] sm:$0xf]
        %v1402 = vld [vmem:[%s1389 + $0x30] sm:$0xf]
        %v1403 = vld [vmem:[%s1389 + $0x34] sm:$0xf]
        %v1404 = vld [vmem:[%s1389 + $0x38] sm:$0xf]
        %v1405 = vld [vmem:[%s1389 + $0x3c] sm:$0xf]
        %v1422 = vunpack.c.l.b16 %v1390
        %v1423 = vunpack.c.l.b16 %v1391
        %v1424 = vunpack.c.l.b16 %v1392
        %v1425 = vunpack.c.l.b16 %v1393
        %v1426 = vunpack.c.l.b16 %v1394
        %v1427 = vunpack.c.l.b16 %v1395
        %v1428 = vunpack.c.l.b16 %v1396
        %v1429 = vunpack.c.l.b16 %v1397
        %v1430 = vunpack.c.l.b16 %v1398
        %v1431 = vunpack.c.l.b16 %v1399
        %v1432 = vunpack.c.l.b16 %v1400
        %v1433 = vunpack.c.l.b16 %v1401
        %v1434 = vunpack.c.l.b16 %v1402
        %v1435 = vunpack.c.l.b16 %v1403
        %v1436 = vunpack.c.l.b16 %v1404
        %v1437 = vunpack.c.l.b16 %v1405
        %v1438 = vpack.c.b16 %v1423, %v1422
        %v1439 = vpack.c.b16 %v1425, %v1424
        %v1440 = vpack.c.b16 %v1427, %v1426
        %v1441 = vpack.c.b16 %v1429, %v1428
        %v1442 = vpack.c.b16 %v1431, %v1430
        %v1443 = vpack.c.b16 %v1433, %v1432
        %v1444 = vpack.c.b16 %v1435, %v1434
        %v1445 = vpack.c.b16 %v1437, %v1436
        %1454 = vmatpush.bf16.msra.mxu0 %v1445
        %1455 = vmatpush.bf16.msra.mxu0 %v1444
        %1456 = vmatpush.bf16.msra.mxu0 %v1443
        %1457 = vmatpush.bf16.msra.mxu0 %v1442
        %1458 = vmatpush.bf16.msra.mxu0 %v1441
        %1459 = vmatpush.bf16.msra.mxu0 %v1440
        %1460 = vmatpush.bf16.msra.mxu0 %v1439
        %1461 = vmatpush.bf16.msra.mxu0 %v1438
        %1462 = vmatmul.bf16.gmra.mxu0 %v1229
        %v1463 = vpop.f32.mrf.mxu0
        %v1464 = vadd.f32 0.0, %v1463
        %v1465 = vpop.f32.mrf.mxu0
        %1466 = vdwg.mxu0
        %v1467 = vxor.u32 %v1464, 2147483648
        %v1468 = vmul.f32 %v1467, 1.442695
        %v1469 = vpow.pop %v1468
        %v1470 = vadd.f32 %v1469, 1.0
        %v1471 = vrcp.pop %v1470
        %v1472 = vmul.f32 %v1470, %v1471
        %v1473 = vsub.f32 1.0, %v1472
        %v1474 = vmul.f32 %v1471, %v1473
        %v1475 = vadd.f32 %v1471, %v1474
        %vm1476 = vweird.f32 %v1470
        %vm1477 = vweird.f32 %v1471
        %vm1478 = vmor %vm1476, %vm1477
        %v1479 = vsel %vm1478, %v1471, %v1475
        %v1480 = vand.u32 2147483647, %v1470
        %vm1481 = vcmp.eq.f32.partialorder %v1480, 8.507059e+37
        %v1482 = vand.u32 %v1470, 2147483648
        %v1483 = vor.u32 1.1754944e-38, %v1482
        %v1484 = vsel %vm1481, %v1483, %v1479
        %v1485 = vmul.f32 1.0, %v1484
        %v1486 = vmul.f32 %v1464, %v1485
        %1488 = vrot.lane.b32.xlu0 %v1464, 64
        %v1489 = vpop.permute.xlu0 %1488
        %v1491 = vmul.f32 %v1486, %v1489
        %v1492 = vpack.c.bf16 %v1491, %v1491
        %s1493 = scalar_lea.vmem %s570, 32
        %v1494 = vld [vmem:[%s1493] sm:$0xf]
        %v1495 = vld [vmem:[%s1493 + $0x4] sm:$0xf]
        %v1496 = vld [vmem:[%s1493 + $0x8] sm:$0xf]
        %v1497 = vld [vmem:[%s1493 + $0xc] sm:$0xf]
        %v1498 = vld [vmem:[%s1493 + $0x10] sm:$0xf]
        %v1499 = vld [vmem:[%s1493 + $0x14] sm:$0xf]
        %v1500 = vld [vmem:[%s1493 + $0x18] sm:$0xf]
        %v1501 = vld [vmem:[%s1493 + $0x1c] sm:$0xf]
        %v1510 = vunpack.c.l.b16 %v1494
        %v1511 = vunpack.c.l.b16 %v1495
        %v1512 = vunpack.c.l.b16 %v1496
        %v1513 = vunpack.c.l.b16 %v1497
        %v1514 = vunpack.c.l.b16 %v1498
        %v1515 = vunpack.c.l.b16 %v1499
        %v1516 = vunpack.c.l.b16 %v1500
        %v1517 = vunpack.c.l.b16 %v1501
        %v1518 = vpack.c.b16 %v1511, %v1510
        %v1519 = vpack.c.b16 %v1513, %v1512
        %v1520 = vpack.c.b16 %v1515, %v1514
        %v1521 = vpack.c.b16 %v1517, %v1516
        %v1527 = vsel %vm1365, %v1492, 0
        %1529 = vmatpush.bf16.msra.mxu0 0
        %1530 = vmatpush.bf16.msra.mxu0 0
        %1531 = vmatpush.bf16.msra.mxu0 0
        %1532 = vmatpush.bf16.msra.mxu0 0
        %1533 = vmatpush.bf16.msra.mxu0 %v1521
        %1534 = vmatpush.bf16.msra.mxu0 %v1520
        %1535 = vmatpush.bf16.msra.mxu0 %v1519
        %1536 = vmatpush.bf16.msra.mxu0 %v1518
        %1537 = vmatmul.bf16.gmra.mxu0 %v1527
        %v1538 = vpop.f32.mrf.mxu0
        %v1539 = vadd.f32 0.0, %v1538
        %v1540 = vpop.f32.mrf.mxu0
        %1541 = vdwg.mxu0
        %vm1542 = vcmp.eq.f32.partialorder %v1114, 1.0
        %v1543 = vsel %vm1542, %v1204, 0.0
        %v1544 = vsel %vm809, %v1543, 0.0
        %1545 = vadd.xlane.f32.xlu0 %v1544
        %v1546 = vpop.xlane.xlu0 %1545
        %v1547 = vmul.f32 %v1546, %v1539
        %v1548 = vadd.f32 %v1388, %v1547
        %s1549 = scalar_lea.vmem %s474, 128 [#allocation4]
        %v1550 = vld [vmem:[%s1549] sm:$0xf]
        %v1551 = vld [vmem:[%s1549 + $0x4] sm:$0xf]
        %v1552 = vld [vmem:[%s1549 + $0x8] sm:$0xf]
        %v1553 = vld [vmem:[%s1549 + $0xc] sm:$0xf]
        %v1554 = vld [vmem:[%s1549 + $0x10] sm:$0xf]
        %v1555 = vld [vmem:[%s1549 + $0x14] sm:$0xf]
        %v1556 = vld [vmem:[%s1549 + $0x18] sm:$0xf]
        %v1557 = vld [vmem:[%s1549 + $0x1c] sm:$0xf]
        %v1558 = vld [vmem:[%s1549 + $0x20] sm:$0xf]
        %v1559 = vld [vmem:[%s1549 + $0x24] sm:$0xf]
        %v1560 = vld [vmem:[%s1549 + $0x28] sm:$0xf]
        %v1561 = vld [vmem:[%s1549 + $0x2c] sm:$0xf]
        %v1562 = vld [vmem:[%s1549 + $0x30] sm:$0xf]
        %v1563 = vld [vmem:[%s1549 + $0x34] sm:$0xf]
        %v1564 = vld [vmem:[%s1549 + $0x38] sm:$0xf]
        %v1565 = vld [vmem:[%s1549 + $0x3c] sm:$0xf]
        %v1582 = vunpack.c.l.b16 %v1550
        %v1583 = vunpack.c.l.b16 %v1551
        %v1584 = vunpack.c.l.b16 %v1552
        %v1585 = vunpack.c.l.b16 %v1553
        %v1586 = vunpack.c.l.b16 %v1554
        %v1587 = vunpack.c.l.b16 %v1555
        %v1588 = vunpack.c.l.b16 %v1556
        %v1589 = vunpack.c.l.b16 %v1557
        %v1590 = vunpack.c.l.b16 %v1558
        %v1591 = vunpack.c.l.b16 %v1559
        %v1592 = vunpack.c.l.b16 %v1560
        %v1593 = vunpack.c.l.b16 %v1561
        %v1594 = vunpack.c.l.b16 %v1562
        %v1595 = vunpack.c.l.b16 %v1563
        %v1596 = vunpack.c.l.b16 %v1564
        %v1597 = vunpack.c.l.b16 %v1565
        %v1598 = vpack.c.b16 %v1583, %v1582
        %v1599 = vpack.c.b16 %v1585, %v1584
        %v1600 = vpack.c.b16 %v1587, %v1586
        %v1601 = vpack.c.b16 %v1589, %v1588
        %v1602 = vpack.c.b16 %v1591, %v1590
        %v1603 = vpack.c.b16 %v1593, %v1592
        %v1604 = vpack.c.b16 %v1595, %v1594
        %v1605 = vpack.c.b16 %v1597, %v1596
        %1614 = vmatpush.bf16.msra.mxu0 %v1605
        %1615 = vmatpush.bf16.msra.mxu0 %v1604
        %1616 = vmatpush.bf16.msra.mxu0 %v1603
        %1617 = vmatpush.bf16.msra.mxu0 %v1602
        %1618 = vmatpush.bf16.msra.mxu0 %v1601
        %1619 = vmatpush.bf16.msra.mxu0 %v1600
        %1620 = vmatpush.bf16.msra.mxu0 %v1599
        %1621 = vmatpush.bf16.msra.mxu0 %v1598
        %1622 = vmatmul.bf16.gmra.mxu0 %v1229
        %v1623 = vpop.f32.mrf.mxu0
        %v1624 = vadd.f32 0.0, %v1623
        %v1625 = vpop.f32.mrf.mxu0
        %1626 = vdwg.mxu0
        %v1627 = vxor.u32 %v1624, 2147483648
        %v1628 = vmul.f32 %v1627, 1.442695
        %v1629 = vpow.pop %v1628
        %v1630 = vadd.f32 %v1629, 1.0
        %v1631 = vrcp.pop %v1630
        %v1632 = vmul.f32 %v1630, %v1631
        %v1633 = vsub.f32 1.0, %v1632
        %v1634 = vmul.f32 %v1631, %v1633
        %v1635 = vadd.f32 %v1631, %v1634
        %vm1636 = vweird.f32 %v1630
        %vm1637 = vweird.f32 %v1631
        %vm1638 = vmor %vm1636, %vm1637
        %v1639 = vsel %vm1638, %v1631, %v1635
        %v1640 = vand.u32 2147483647, %v1630
        %vm1641 = vcmp.eq.f32.partialorder %v1640, 8.507059e+37
        %v1642 = vand.u32 %v1630, 2147483648
        %v1643 = vor.u32 1.1754944e-38, %v1642
        %v1644 = vsel %vm1641, %v1643, %v1639
        %v1645 = vmul.f32 1.0, %v1644
        %v1646 = vmul.f32 %v1624, %v1645
        %1648 = vrot.lane.b32.xlu0 %v1624, 64
        %v1649 = vpop.permute.xlu0 %1648
        %v1651 = vmul.f32 %v1646, %v1649
        %v1652 = vpack.c.bf16 %v1651, %v1651
        %s1653 = scalar_lea.vmem %s570, 64
        %v1654 = vld [vmem:[%s1653] sm:$0xf]
        %v1655 = vld [vmem:[%s1653 + $0x4] sm:$0xf]
        %v1656 = vld [vmem:[%s1653 + $0x8] sm:$0xf]
        %v1657 = vld [vmem:[%s1653 + $0xc] sm:$0xf]
        %v1658 = vld [vmem:[%s1653 + $0x10] sm:$0xf]
        %v1659 = vld [vmem:[%s1653 + $0x14] sm:$0xf]
        %v1660 = vld [vmem:[%s1653 + $0x18] sm:$0xf]
        %v1661 = vld [vmem:[%s1653 + $0x1c] sm:$0xf]
        %v1670 = vunpack.c.l.b16 %v1654
        %v1671 = vunpack.c.l.b16 %v1655
        %v1672 = vunpack.c.l.b16 %v1656
        %v1673 = vunpack.c.l.b16 %v1657
        %v1674 = vunpack.c.l.b16 %v1658
        %v1675 = vunpack.c.l.b16 %v1659
        %v1676 = vunpack.c.l.b16 %v1660
        %v1677 = vunpack.c.l.b16 %v1661
        %v1678 = vpack.c.b16 %v1671, %v1670
        %v1679 = vpack.c.b16 %v1673, %v1672
        %v1680 = vpack.c.b16 %v1675, %v1674
        %v1681 = vpack.c.b16 %v1677, %v1676
        %v1687 = vsel %vm1365, %v1652, 0
        %1689 = vmatpush.bf16.msra.mxu0 0
        %1690 = vmatpush.bf16.msra.mxu0 0
        %1691 = vmatpush.bf16.msra.mxu0 0
        %1692 = vmatpush.bf16.msra.mxu0 0
        %1693 = vmatpush.bf16.msra.mxu0 %v1681
        %1694 = vmatpush.bf16.msra.mxu0 %v1680
        %1695 = vmatpush.bf16.msra.mxu0 %v1679
        %1696 = vmatpush.bf16.msra.mxu0 %v1678
        %1697 = vmatmul.bf16.gmra.mxu0 %v1687
        %v1698 = vpop.f32.mrf.mxu0
        %v1699 = vadd.f32 0.0, %v1698
        %v1700 = vpop.f32.mrf.mxu0
        %1701 = vdwg.mxu0
        %vm1702 = vcmp.eq.f32.partialorder %v1114, 2.0
        %v1703 = vsel %vm1702, %v1204, 0.0
        %v1704 = vsel %vm809, %v1703, 0.0
        %1705 = vadd.xlane.f32.xlu0 %v1704
        %v1706 = vpop.xlane.xlu0 %1705
        %v1707 = vmul.f32 %v1706, %v1699
        %v1708 = vadd.f32 %v1548, %v1707
        %s1709 = scalar_lea.vmem %s474, 192 [#allocation4]
        %v1710 = vld [vmem:[%s1709] sm:$0xf]
        %v1711 = vld [vmem:[%s1709 + $0x4] sm:$0xf]
        %v1712 = vld [vmem:[%s1709 + $0x8] sm:$0xf]
        %v1713 = vld [vmem:[%s1709 + $0xc] sm:$0xf]
        %v1714 = vld [vmem:[%s1709 + $0x10] sm:$0xf]
        %v1715 = vld [vmem:[%s1709 + $0x14] sm:$0xf]
        %v1716 = vld [vmem:[%s1709 + $0x18] sm:$0xf]
        %v1717 = vld [vmem:[%s1709 + $0x1c] sm:$0xf]
        %v1718 = vld [vmem:[%s1709 + $0x20] sm:$0xf]
        %v1719 = vld [vmem:[%s1709 + $0x24] sm:$0xf]
        %v1720 = vld [vmem:[%s1709 + $0x28] sm:$0xf]
        %v1721 = vld [vmem:[%s1709 + $0x2c] sm:$0xf]
        %v1722 = vld [vmem:[%s1709 + $0x30] sm:$0xf]
        %v1723 = vld [vmem:[%s1709 + $0x34] sm:$0xf]
        %v1724 = vld [vmem:[%s1709 + $0x38] sm:$0xf]
        %v1725 = vld [vmem:[%s1709 + $0x3c] sm:$0xf]
        %v1742 = vunpack.c.l.b16 %v1710
        %v1743 = vunpack.c.l.b16 %v1711
        %v1744 = vunpack.c.l.b16 %v1712
        %v1745 = vunpack.c.l.b16 %v1713
        %v1746 = vunpack.c.l.b16 %v1714
        %v1747 = vunpack.c.l.b16 %v1715
        %v1748 = vunpack.c.l.b16 %v1716
        %v1749 = vunpack.c.l.b16 %v1717
        %v1750 = vunpack.c.l.b16 %v1718
        %v1751 = vunpack.c.l.b16 %v1719
        %v1752 = vunpack.c.l.b16 %v1720
        %v1753 = vunpack.c.l.b16 %v1721
        %v1754 = vunpack.c.l.b16 %v1722
        %v1755 = vunpack.c.l.b16 %v1723
        %v1756 = vunpack.c.l.b16 %v1724
        %v1757 = vunpack.c.l.b16 %v1725
        %v1758 = vpack.c.b16 %v1743, %v1742
        %v1759 = vpack.c.b16 %v1745, %v1744
        %v1760 = vpack.c.b16 %v1747, %v1746
        %v1761 = vpack.c.b16 %v1749, %v1748
        %v1762 = vpack.c.b16 %v1751, %v1750
        %v1763 = vpack.c.b16 %v1753, %v1752
        %v1764 = vpack.c.b16 %v1755, %v1754
        %v1765 = vpack.c.b16 %v1757, %v1756
        %1774 = vmatpush.bf16.msra.mxu0 %v1765
        %1775 = vmatpush.bf16.msra.mxu0 %v1764
        %1776 = vmatpush.bf16.msra.mxu0 %v1763
        %1777 = vmatpush.bf16.msra.mxu0 %v1762
        %1778 = vmatpush.bf16.msra.mxu0 %v1761
        %1779 = vmatpush.bf16.msra.mxu0 %v1760
        %1780 = vmatpush.bf16.msra.mxu0 %v1759
        %1781 = vmatpush.bf16.msra.mxu0 %v1758
        %1782 = vmatmul.bf16.gmra.mxu0 %v1229
        %v1783 = vpop.f32.mrf.mxu0
        %v1784 = vadd.f32 0.0, %v1783
        %v1785 = vpop.f32.mrf.mxu0
        %1786 = vdwg.mxu0
        %v1787 = vxor.u32 %v1784, 2147483648
        %v1788 = vmul.f32 %v1787, 1.442695
        %v1789 = vpow.pop %v1788
        %v1790 = vadd.f32 %v1789, 1.0
        %v1791 = vrcp.pop %v1790
        %v1792 = vmul.f32 %v1790, %v1791
        %v1793 = vsub.f32 1.0, %v1792
        %v1794 = vmul.f32 %v1791, %v1793
        %v1795 = vadd.f32 %v1791, %v1794
        %vm1796 = vweird.f32 %v1790
        %vm1797 = vweird.f32 %v1791
        %vm1798 = vmor %vm1796, %vm1797
        %v1799 = vsel %vm1798, %v1791, %v1795
        %v1800 = vand.u32 2147483647, %v1790
        %vm1801 = vcmp.eq.f32.partialorder %v1800, 8.507059e+37
        %v1802 = vand.u32 %v1790, 2147483648
        %v1803 = vor.u32 1.1754944e-38, %v1802
        %v1804 = vsel %vm1801, %v1803, %v1799
        %v1805 = vmul.f32 1.0, %v1804
        %v1806 = vmul.f32 %v1784, %v1805
        %1808 = vrot.lane.b32.xlu0 %v1784, 64
        %v1809 = vpop.permute.xlu0 %1808
        %v1811 = vmul.f32 %v1806, %v1809
        %v1812 = vpack.c.bf16 %v1811, %v1811
        %s1813 = scalar_lea.vmem %s570, 96
        %v1814 = vld [vmem:[%s1813] sm:$0xf]
        %v1815 = vld [vmem:[%s1813 + $0x4] sm:$0xf]
        %v1816 = vld [vmem:[%s1813 + $0x8] sm:$0xf]
        %v1817 = vld [vmem:[%s1813 + $0xc] sm:$0xf]
        %v1818 = vld [vmem:[%s1813 + $0x10] sm:$0xf]
        %v1819 = vld [vmem:[%s1813 + $0x14] sm:$0xf]
        %v1820 = vld [vmem:[%s1813 + $0x18] sm:$0xf]
        %v1821 = vld [vmem:[%s1813 + $0x1c] sm:$0xf]
        %v1830 = vunpack.c.l.b16 %v1814
        %v1831 = vunpack.c.l.b16 %v1815
        %v1832 = vunpack.c.l.b16 %v1816
        %v1833 = vunpack.c.l.b16 %v1817
        %v1834 = vunpack.c.l.b16 %v1818
        %v1835 = vunpack.c.l.b16 %v1819
        %v1836 = vunpack.c.l.b16 %v1820
        %v1837 = vunpack.c.l.b16 %v1821
        %v1838 = vpack.c.b16 %v1831, %v1830
        %v1839 = vpack.c.b16 %v1833, %v1832
        %v1840 = vpack.c.b16 %v1835, %v1834
        %v1841 = vpack.c.b16 %v1837, %v1836
        %v1847 = vsel %vm1365, %v1812, 0
        %1849 = vmatpush.bf16.msra.mxu0 0
        %1850 = vmatpush.bf16.msra.mxu0 0
        %1851 = vmatpush.bf16.msra.mxu0 0
        %1852 = vmatpush.bf16.msra.mxu0 0
        %1853 = vmatpush.bf16.msra.mxu0 %v1841
        %1854 = vmatpush.bf16.msra.mxu0 %v1840
        %1855 = vmatpush.bf16.msra.mxu0 %v1839
        %1856 = vmatpush.bf16.msra.mxu0 %v1838
        %1857 = vmatmul.bf16.gmra.mxu0 %v1847
        %v1858 = vpop.f32.mrf.mxu0
        %v1859 = vadd.f32 0.0, %v1858
        %v1860 = vpop.f32.mrf.mxu0
        %1861 = vdwg.mxu0
        %vm1862 = vcmp.eq.f32.partialorder %v1114, 3.0
        %v1863 = vsel %vm1862, %v1204, 0.0
        %v1864 = vsel %vm809, %v1863, 0.0
        %1865 = vadd.xlane.f32.xlu0 %v1864
        %v1866 = vpop.xlane.xlu0 %1865
        %v1867 = vmul.f32 %v1866, %v1859
        %v1868 = vadd.f32 %v1708, %v1867
        %s1869 = scalar_lea.vmem %s474, 256 [#allocation4]
        %v1870 = vld [vmem:[%s1869] sm:$0xf]
        %v1871 = vld [vmem:[%s1869 + $0x4] sm:$0xf]
        %v1872 = vld [vmem:[%s1869 + $0x8] sm:$0xf]
        %v1873 = vld [vmem:[%s1869 + $0xc] sm:$0xf]
        %v1874 = vld [vmem:[%s1869 + $0x10] sm:$0xf]
        %v1875 = vld [vmem:[%s1869 + $0x14] sm:$0xf]
        %v1876 = vld [vmem:[%s1869 + $0x18] sm:$0xf]
        %v1877 = vld [vmem:[%s1869 + $0x1c] sm:$0xf]
        %v1878 = vld [vmem:[%s1869 + $0x20] sm:$0xf]
        %v1879 = vld [vmem:[%s1869 + $0x24] sm:$0xf]
        %v1880 = vld [vmem:[%s1869 + $0x28] sm:$0xf]
        %v1881 = vld [vmem:[%s1869 + $0x2c] sm:$0xf]
        %v1882 = vld [vmem:[%s1869 + $0x30] sm:$0xf]
        %v1883 = vld [vmem:[%s1869 + $0x34] sm:$0xf]
        %v1884 = vld [vmem:[%s1869 + $0x38] sm:$0xf]
        %v1885 = vld [vmem:[%s1869 + $0x3c] sm:$0xf]
        %v1902 = vunpack.c.l.b16 %v1870
        %v1903 = vunpack.c.l.b16 %v1871
        %v1904 = vunpack.c.l.b16 %v1872
        %v1905 = vunpack.c.l.b16 %v1873
        %v1906 = vunpack.c.l.b16 %v1874
        %v1907 = vunpack.c.l.b16 %v1875
        %v1908 = vunpack.c.l.b16 %v1876
        %v1909 = vunpack.c.l.b16 %v1877
        %v1910 = vunpack.c.l.b16 %v1878
        %v1911 = vunpack.c.l.b16 %v1879
        %v1912 = vunpack.c.l.b16 %v1880
        %v1913 = vunpack.c.l.b16 %v1881
        %v1914 = vunpack.c.l.b16 %v1882
        %v1915 = vunpack.c.l.b16 %v1883
        %v1916 = vunpack.c.l.b16 %v1884
        %v1917 = vunpack.c.l.b16 %v1885
        %v1918 = vpack.c.b16 %v1903, %v1902
        %v1919 = vpack.c.b16 %v1905, %v1904
        %v1920 = vpack.c.b16 %v1907, %v1906
        %v1921 = vpack.c.b16 %v1909, %v1908
        %v1922 = vpack.c.b16 %v1911, %v1910
        %v1923 = vpack.c.b16 %v1913, %v1912
        %v1924 = vpack.c.b16 %v1915, %v1914
        %v1925 = vpack.c.b16 %v1917, %v1916
        %1934 = vmatpush.bf16.msra.mxu0 %v1925
        %1935 = vmatpush.bf16.msra.mxu0 %v1924
        %1936 = vmatpush.bf16.msra.mxu0 %v1923
        %1937 = vmatpush.bf16.msra.mxu0 %v1922
        %1938 = vmatpush.bf16.msra.mxu0 %v1921
        %1939 = vmatpush.bf16.msra.mxu0 %v1920
        %1940 = vmatpush.bf16.msra.mxu0 %v1919
        %1941 = vmatpush.bf16.msra.mxu0 %v1918
        %1942 = vmatmul.bf16.gmra.mxu0 %v1229
        %v1943 = vpop.f32.mrf.mxu0
        %v1944 = vadd.f32 0.0, %v1943
        %v1945 = vpop.f32.mrf.mxu0
        %1946 = vdwg.mxu0
        %v1947 = vxor.u32 %v1944, 2147483648
        %v1948 = vmul.f32 %v1947, 1.442695
        %v1949 = vpow.pop %v1948
        %v1950 = vadd.f32 %v1949, 1.0
        %v1951 = vrcp.pop %v1950
        %v1952 = vmul.f32 %v1950, %v1951
        %v1953 = vsub.f32 1.0, %v1952
        %v1954 = vmul.f32 %v1951, %v1953
        %v1955 = vadd.f32 %v1951, %v1954
        %vm1956 = vweird.f32 %v1950
        %vm1957 = vweird.f32 %v1951
        %vm1958 = vmor %vm1956, %vm1957
        %v1959 = vsel %vm1958, %v1951, %v1955
        %v1960 = vand.u32 2147483647, %v1950
        %vm1961 = vcmp.eq.f32.partialorder %v1960, 8.507059e+37
        %v1962 = vand.u32 %v1950, 2147483648
        %v1963 = vor.u32 1.1754944e-38, %v1962
        %v1964 = vsel %vm1961, %v1963, %v1959
        %v1965 = vmul.f32 1.0, %v1964
        %v1966 = vmul.f32 %v1944, %v1965
        %1968 = vrot.lane.b32.xlu0 %v1944, 64
        %v1969 = vpop.permute.xlu0 %1968
        %v1971 = vmul.f32 %v1966, %v1969
        %v1972 = vpack.c.bf16 %v1971, %v1971
        %s1973 = scalar_lea.vmem %s570, 128
        %v1974 = vld [vmem:[%s1973] sm:$0xf]
        %v1975 = vld [vmem:[%s1973 + $0x4] sm:$0xf]
        %v1976 = vld [vmem:[%s1973 + $0x8] sm:$0xf]
        %v1977 = vld [vmem:[%s1973 + $0xc] sm:$0xf]
        %v1978 = vld [vmem:[%s1973 + $0x10] sm:$0xf]
        %v1979 = vld [vmem:[%s1973 + $0x14] sm:$0xf]
        %v1980 = vld [vmem:[%s1973 + $0x18] sm:$0xf]
        %v1981 = vld [vmem:[%s1973 + $0x1c] sm:$0xf]
        %v1990 = vunpack.c.l.b16 %v1974
        %v1991 = vunpack.c.l.b16 %v1975
        %v1992 = vunpack.c.l.b16 %v1976
        %v1993 = vunpack.c.l.b16 %v1977
        %v1994 = vunpack.c.l.b16 %v1978
        %v1995 = vunpack.c.l.b16 %v1979
        %v1996 = vunpack.c.l.b16 %v1980
        %v1997 = vunpack.c.l.b16 %v1981
        %v1998 = vpack.c.b16 %v1991, %v1990
        %v1999 = vpack.c.b16 %v1993, %v1992
        %v2000 = vpack.c.b16 %v1995, %v1994
        %v2001 = vpack.c.b16 %v1997, %v1996
        %v2007 = vsel %vm1365, %v1972, 0
        %2009 = vmatpush.bf16.msra.mxu0 0
        %2010 = vmatpush.bf16.msra.mxu0 0
        %2011 = vmatpush.bf16.msra.mxu0 0
        %2012 = vmatpush.bf16.msra.mxu0 0
        %2013 = vmatpush.bf16.msra.mxu0 %v2001
        %2014 = vmatpush.bf16.msra.mxu0 %v2000
        %2015 = vmatpush.bf16.msra.mxu0 %v1999
        %2016 = vmatpush.bf16.msra.mxu0 %v1998
        %2017 = vmatmul.bf16.gmra.mxu0 %v2007
        %v2018 = vpop.f32.mrf.mxu0
        %v2019 = vadd.f32 0.0, %v2018
        %v2020 = vpop.f32.mrf.mxu0
        %2021 = vdwg.mxu0
        %v2022 = vmul.f32 %v1228, %v2019
        %v2023 = vadd.f32 %v1868, %v2022
        %2024 = vst [vmem:[#allocation2] sm:$0xff] %v2023
        %2025 = vst [vmem:[#allocation3] sm:$0xff] %v1092
        %p2026 = scmp.eq.s32.totalorder %s28, 1
        // Predicated region
        $region81: #{model_forward.1} parent=71 // pred_check
          %p2027 = pneg %p2026
        $region82: #{model_forward.1} parent=71 // pred_check_branch
          %2029 = sbr.rel (%p2027) target = $region84
        $region83: #{model_forward.1} parent=71 // pred_region
          %v2030 = vadd.f32 %v2023, %v1092
          %v2031 = vmul.f32 %v2030, %v2030
          %2032 = vadd.xlane.f32.xlu0 %v2031
          %v2033 = vpop.xlane.xlu0 %2032
          %v2034 = vmul.f32 %v2033, 0.015625
          %v2035 = vadd.f32 %v2034, 1e-06
          %v2036 = vrsqrt.pop %v2035
          %v2037 = vmul.f32 %v2036, %v2035
          %v2038 = vmul.f32 %v2037, %v2036
          %v2039 = vmul.f32 0.5, %v2038
          %v2040 = vsub.f32 1.5, %v2039
          %v2041 = vmul.f32 %v2036, %v2040
          %vm2042 = vweird.f32 %v2035
          %vm2043 = vweird.f32 %v2036
          %vm2044 = vmor %vm2042, %vm2043
          %v2045 = vsel %vm2044, %v2036, %v2041
          %v2046 = vmul.f32 %v2030, %v2045
          %v2047 = vld [vmem:[%s4] sm:$0x1]
          %v2049 = vperm.slane %v2047, 0
          %v2051 = vmul.f32 %v2046, %v2049
          %2052 = vst [vmem:[#allocation7] sm:$0xff] %v2051
        $region84: #{model_forward.1} parent=71 // pred_fallthru
          _
        // Predicated region
        $region85: #{model_forward.1} parent=71 // pred_check
          %p2053 = pneg %p354
        $region86: #{model_forward.1} parent=71 // pred_check_branch
          %2055 = sbr.rel (%p2053) target = $region88
        $region87: #{model_forward.1} parent=71 // pred_region
          %2057 = vsyncadd [#allocation6], 0
          %s2059 = sshll.u32 [#allocation7], 4
          %s2060 = int_to_ptr.vmem [resolvable:$true] %s2059
          %s2061 = sshll.u32 %s13, 4
          %s2062 = int_to_ptr.hbm [resolvable:$true] %s2061
          %2064 = dma.vmem_to_hbm [thread:$0]  %s2060, 128, %s2062, [#allocation6]
        $region88: #{model_forward.1} parent=71 // pred_fallthru
          _
        // Predicated region
        $region89: #{model_forward.1} parent=71 // pred_check
          %p2065 = pneg %p354
        $region90: #{model_forward.1} parent=71 // pred_check_branch
          %2067 = sbr.rel (%p2065) target = $region92
        $region91: #{model_forward.1} parent=71 // pred_region
          %2069 = dma.done [#allocation6], 128
        $region92: #{model_forward.1} parent=71 // pred_fallthru
          _
      $region72: #{model_forward.1} parent=5 // pred_fallthru
        _
      %p2070 = scmp.le.s32.totalorder 2, %s23
      // Predicated region
      $region93: #{model_forward.1} parent=5 // pred_check
        %p2071 = pneg %p2070
      $region94: #{model_forward.1} parent=5 // pred_check_branch
        %2073 = sbr.rel (%p2071) target = $region96
      $region95: #{model_forward.1} parent=5 // pred_region
        %s2074 = ssub.s32 %s23, 2
      $region96: #{model_forward.1} parent=5 // pred_fallthru
        _
    $region6: #{model_forward.1} parent=1 // loop_footer
      %s27 = sadd.s32 1, %s23
    $region7: #{model_forward.1} parent=1 // loop_footer_branch
      %22 = sbr.rel target = $region3
    $region8: #{model_forward.1} parent=1 // loop_exit
      _
    %2075 = vsyncpa [#allocation5], 1
    %s2076 = scalar_lea.sflag [#allocation5], 1
    %2077 = vsyncpa %s2076, 1
    %2078 = vsyncpa [#allocation6], 1
    %s2079 = scalar_lea.sflag [#allocation6], 1
    %2080 = vsyncpa %s2079, 1

</llo_original>
